<compile_context>
chip_gen: v7x
topology: tpu7x:2x2x1
jax: 0.10.0
libtpu: 0.0.40
codegen_flags: <defaults>
</compile_context>

<pallas_src>
import jax
import jax.numpy as jnp
from jax.experimental import pallas as pl
from jax.experimental.pallas import tpu as pltpu

NC = 2        # leading "core" grid axis: vocab halves shard across v7x's 2 TCs
TN_MAX = 2048 # upper bound on the vocab tile width (multiple of 128)


def _pick_vocab_tile(vs, nc=NC, tn_max=TN_MAX):
    """Largest multiple of 128 <= tn_max that divides the per-core vocab slice."""
    assert vs % (nc * 128) == 0, "vocab size must be a multiple of NC*128"
    per_core = vs // nc
    tn = 128
    cand = 128
    while cand <= min(tn_max, per_core):
        if per_core % cand == 0:
            tn = cand
        cand += 128
    return tn


def _decoder_step_kernel(ids_ref, emb_hbm_ref, h_ref, wi_ref, wh_ref, bi_ref, bh_ref,
                         wout_ref, bout_ref,
                         logits_ref, hnew_ref,
                         emb_vmem, hnew16_vmem, dma_sems):
    """Fused: embedding DMA-gather + one GRU step (on each core's first vocab tile)
    followed by one (B, TN) tile of the output projection."""
    j = pl.program_id(1)                  # vocab-tile index within this core's slice
    B, hs = h_ref.shape

    @pl.when(j == 0)
    def _():
        # 1) Kick off the B tiny embedding-row gathers (latency-bound DMAs).
        copies = []
        for b in range(B):
            cp = pltpu.make_async_copy(
                emb_hbm_ref.at[pl.ds(ids_ref[b], 1), :],
                emb_vmem.at[pl.ds(b, 1), :],
                dma_sems.at[b],
            )
            cp.start()
            copies.append(cp)

        # 2) h-path gate matmul has no dependence on the gathered rows, so it
        #    runs while the DMAs are in flight (hides the gather latency).
        h = h_ref[...]                                                  # (B, HS) f32
        gh = jnp.dot(h.astype(jnp.bfloat16), wh_ref[...],
                     preferred_element_type=jnp.float32) + bh_ref[...]

        # 3) Wait for the rows, then the x-path gate matmul.
        for cp in copies:
            cp.wait()
        x16 = emb_vmem[...].astype(jnp.bfloat16)                        # (B, ES) bf16
        gi = jnp.dot(x16, wi_ref[...],
                     preferred_element_type=jnp.float32) + bi_ref[...]

        # PyTorch GRU gate order (r, z, n); all elementwise math in f32.
        r = jax.nn.sigmoid(gi[:, 0:hs] + gh[:, 0:hs])
        z = jax.nn.sigmoid(gi[:, hs:2 * hs] + gh[:, hs:2 * hs])
        n = jnp.tanh(gi[:, 2 * hs:3 * hs] + r * gh[:, 2 * hs:3 * hs])
        h_new = (1.0 - z) * n + z * h

        hnew_ref[...] = h_new                          # this core's copy of the new state
        hnew16_vmem[...] = h_new.astype(jnp.bfloat16)  # resident bf16 operand for projection

    # Projection tile: logits[:, tile] = h_new @ w_out[:, tile] + b_out[:, tile].
    logits_ref[...] = (
        jnp.dot(hnew16_vmem[...], wout_ref[...], preferred_element_type=jnp.float32)
        + bout_ref[...]
    )


def init_decoder_params(key, vs, es, hs):
    """Parameters in PyTorch layout (reference / checkpoint compatibility)."""
    ks = jax.random.split(key, 10)
    scale = 0.1
    return {
        "embedding": scale * jax.random.normal(ks[0], (vs, es), jnp.float32),
        # PyTorch: weight_ih_l0 (3*hs, es), weight_hh_l0 (3*hs, hs), gate order r,z,n.
        "w_ih": scale * jax.random.normal(ks[1], (3 * hs, es), jnp.float32),
        "w_hh": scale * jax.random.normal(ks[2], (3 * hs, hs), jnp.float32),
        "b_ih": scale * jax.random.normal(ks[3], (3 * hs,), jnp.float32),
        "b_hh": scale * jax.random.normal(ks[4], (3 * hs,), jnp.float32),
        # PyTorch Linear: weight (vs, hs), bias (vs,)
        "w_out": scale * jax.random.normal(ks[5], (vs, hs), jnp.float32),
        "b_out": scale * jax.random.normal(ks[6], (vs,), jnp.float32),
    }


def prepare_decoder_params(params):
    """One-time (per model, NOT per token) conversion to kernel-ready layout."""
    return {
        "embedding": params["embedding"],                         # (VS, ES) f32, stays in HBM
        "wi_all": params["w_ih"].T.astype(jnp.bfloat16),          # (ES, 3*HS) bf16
        "wh_all": params["w_hh"].T.astype(jnp.bfloat16),          # (HS, 3*HS) bf16
        "bi_all": params["b_ih"].reshape(1, -1),                  # (1, 3*HS) f32
        "bh_all": params["b_hh"].reshape(1, -1),                  # (1, 3*HS) f32
        "w_out": params["w_out"].T.astype(jnp.bfloat16),          # (HS, VS) bf16
        "b_out": params["b_out"].reshape(1, -1),                  # (1, VS) f32
    }


def decoder_rnn_forward(x_ids, h, prepped):
    """x_ids: (B, 1) int32; h: (1, B, HS) f32 -> (logits (B, VS), hn (1, B, HS))."""
    vs, es = prepped["embedding"].shape
    hs = prepped["wh_all"].shape[0]
    nl, B, _ = h.shape
    assert nl == 1, "single-layer GRU only"

    tn = _pick_vocab_tile(vs)
    n_inner = vs // (NC * tn)             # vocab tiles per core

    ids = x_ids[:, 0].astype(jnp.int32)   # (B,) token ids -> SMEM
    h0 = h[0]                             # (B, HS)

    cost = pl.CostEstimate(
        flops=2 * B * (es + hs) * 3 * hs + 2 * B * hs * vs,
        transcendentals=3 * B * hs,
        bytes_accessed=((es + hs) * 3 * hs * 2 + 2 * 3 * hs * 4    # GRU weights/biases
                        + hs * vs * 2 + vs * 4                     # w_out / b_out
                        + B * es * 4 + 2 * B * hs * 4 + B * vs * 4),
    )

    # Explicit scoped-VMEM budget so large vocab tiles also fit v5e's 16 MiB default.
    vmem_est = ((es + hs) * 3 * hs * 2 + 2 * 3 * hs * 4 + B * hs * 4   # resident weights + h0
                + 2 * (hs * tn * 2 + tn * 4 + B * tn * 4)             # double-buffered tiles
                + B * es * 4 + B * hs * 2 + NC * B * hs * 4)          # scratch + h_new out
    vmem_limit = int(min(2 * vmem_est + (16 << 20), 64 << 20))

    logits, h_new_all = pl.pallas_call(
        _decoder_step_kernel,
        out_shape=(jax.ShapeDtypeStruct((B, vs), jnp.float32),
                   jax.ShapeDtypeStruct((NC, B, hs), jnp.float32)),
        grid=(NC, n_inner),
        in_specs=[
            pl.BlockSpec(memory_space=pltpu.MemorySpace.SMEM),   # token ids
            pl.BlockSpec(memory_space=pl.ANY),                   # embedding table (HBM)
            pl.BlockSpec(memory_space=pltpu.MemorySpace.VMEM),   # h0 (resident)
            pl.BlockSpec(memory_space=pltpu.MemorySpace.VMEM),   # wi_all (resident)
            pl.BlockSpec(memory_space=pltpu.MemorySpace.VMEM),   # wh_all (resident)
            pl.BlockSpec(memory_space=pltpu.MemorySpace.VMEM),   # bi_all
            pl.BlockSpec(memory_space=pltpu.MemorySpace.VMEM),   # bh_all
            pl.BlockSpec((hs, tn), lambda c, j: (0, c * n_inner + j)),  # w_out tile (streamed)
            pl.BlockSpec((1, tn), lambda c, j: (0, c * n_inner + j)),   # b_out tile
        ],
        out_specs=(
            pl.BlockSpec((B, tn), lambda c, j: (0, c * n_inner + j)),   # logits tile
            pl.BlockSpec((None, B, hs), lambda c, j: (c, 0, 0)),        # per-core h_new
        ),
        scratch_shapes=[
            pltpu.VMEM((B, es), jnp.float32),        # gathered embedding rows
            pltpu.VMEM((B, hs), jnp.bfloat16),       # resident bf16 h_new for projection
            pltpu.SemaphoreType.DMA((B,)),           # one DMA sem per gathered row
        ],
        compiler_params=pltpu.CompilerParams(
            dimension_semantics=("parallel", "arbitrary"),
            vmem_limit_bytes=vmem_limit,
        ),
        cost_estimate=cost,
    )(ids, prepped["embedding"], h0,
      prepped["wi_all"], prepped["wh_all"], prepped["bi_all"], prepped["bh_all"],
      prepped["w_out"], prepped["b_out"])

    # All cores compute identical h_new; take slot 0 and restore the (nl, B, HS) shape.
    return logits, h_new_all[0][None, :, :]


def _reference_forward(x_ids, h, params):
    """Pure-JAX f32 reference replicating torch.nn.GRU / Linear semantics.

    Weights are rounded through bf16 (matching the kernel's stored precision),
    so only activation rounding differs between kernel and reference.
    """
    hs = params["w_hh"].shape[1]
    q = lambda w: w.astype(jnp.bfloat16).astype(jnp.float32)
    emb = params["embedding"][x_ids[:, 0]]
    h0 = h[0]
    gi = emb @ q(params["w_ih"]).T + params["b_ih"]
    gh = h0 @ q(params["w_hh"]).T + params["b_hh"]
    r = jax.nn.sigmoid(gi[:, 0:hs] + gh[:, 0:hs])
    z = jax.nn.sigmoid(gi[:, hs:2 * hs] + gh[:, hs:2 * hs])
    n = jnp.tanh(gi[:, 2 * hs:] + r * gh[:, 2 * hs:])
    h_new = (1.0 - z) * n + z * h0
    logits = h_new @ q(params["w_out"]).T + params["b_out"]
    return logits, h_new[None, :, :]


if __name__ == "__main__":
    # Lane-dense dims (multiples of 128); B = one f32 sublane; VS big enough to give
    # 2 vocab tiles per core (exercises the fused GRU-once / project-per-tile path).
    VS, ES, HS, NL = 8192, 128, 128, 1
    B = 8

    key = jax.random.PRNGKey(0)
    k_param, k_x, k_h = jax.random.split(key, 3)

    params = init_decoder_params(k_param, VS, ES, HS)
    prepped = prepare_decoder_params(params)              # one-time weight prep

    x_ids = jax.random.randint(k_x, (B, 1), 0, VS, dtype=jnp.int32)   # (B, T=1)
    h = 0.1 * jax.random.normal(k_h, (NL, B, HS), jnp.float32)

    forward = jax.jit(decoder_rnn_forward)
    logits, hn = forward(x_ids, h, prepped)
    jax.block_until_ready((logits, hn))

    ref_logits, ref_hn = _reference_forward(x_ids, h, params)
    assert logits.shape == (B, VS) and hn.shape == (NL, B, HS)
    # Tolerances account for bf16 activation rounding inside the MXU matmuls.
    assert jnp.allclose(logits, ref_logits, atol=3e-2, rtol=3e-2)
    assert jnp.allclose(hn, ref_hn, atol=3e-2, rtol=3e-2)

    print("KERNEL_OK")
</pallas_src>

<mosaic_0001>
module attributes {stable_mosaic.version = 11 : i64} {
  func.func @_decoder_step_kernel(%arg0: i32, %arg1: i32, %arg2: memref<8xi32, #tpu.memory_space<smem>>, %arg3: memref<8192x128xf32, #tpu.memory_space<any>>, %arg4: memref<8x128xf32, #tpu.memory_space<vmem>>, %arg5: memref<128x384xbf16, #tpu.memory_space<vmem>>, %arg6: memref<128x384xbf16, #tpu.memory_space<vmem>>, %arg7: memref<1x384xf32, #tpu.memory_space<vmem>>, %arg8: memref<1x384xf32, #tpu.memory_space<vmem>>, %arg9: memref<128x2048xbf16, #tpu.memory_space<vmem>>, %arg10: memref<1x2048xf32, #tpu.memory_space<vmem>>, %arg11: memref<8x2048xf32, #tpu.memory_space<vmem>>, %arg12: memref<1x8x128xf32, #tpu.memory_space<vmem>>, %arg13: memref<8x128xf32, #tpu.memory_space<vmem>>, %arg14: memref<8x128xbf16, #tpu.memory_space<vmem>>, %arg15: memref<8x!tpu.dma_semaphore, #tpu.memory_space<semaphore_mem>>) attributes {dimension_semantics = [#tpu.dimension_semantics<parallel>, #tpu.dimension_semantics<arbitrary>], iteration_bounds = array<i64: 2, 2>, scalar_prefetch = 0 : i64, scratch_operands = 3 : i64, tpu.core_type = #tpu.core_type<tc>, window_params = [{transform_indices = @transform_0, window_bounds = array<i64: 8>}, {}, {pipeline_mode = #tpu.pipeline_mode<synchronous>, transform_indices = @transform_2, window_bounds = array<i64: 8, 128>}, {pipeline_mode = #tpu.pipeline_mode<synchronous>, transform_indices = @transform_3, window_bounds = array<i64: 128, 384>}, {pipeline_mode = #tpu.pipeline_mode<synchronous>, transform_indices = @transform_4, window_bounds = array<i64: 128, 384>}, {pipeline_mode = #tpu.pipeline_mode<synchronous>, transform_indices = @transform_5, window_bounds = array<i64: 1, 384>}, {pipeline_mode = #tpu.pipeline_mode<synchronous>, transform_indices = @transform_6, window_bounds = array<i64: 1, 384>}, {transform_indices = @transform_7, window_bounds = array<i64: 128, 2048>}, {transform_indices = @transform_8, window_bounds = array<i64: 1, 2048>}, {transform_indices = @transform_9, window_bounds = array<i64: 8, 2048>}, {transform_indices = @transform_10, window_bounds = array<i64: 1, 8, 128>}]} {
    %c0_i32 = arith.constant 0 : i32
    %0 = arith.cmpi eq, %arg1, %c0_i32 : i32
    %1 = arith.extui %0 : i1 to i32
    %c0_i32_0 = arith.constant 0 : i32
    %2 = arith.cmpi ne, %1, %c0_i32_0 : i32
    scf.if %2 {
      %c0_8 = arith.constant 0 : index
      %10 = memref.load %arg2[%c0_8] : memref<8xi32, #tpu.memory_space<smem>>
      %c0_i32_9 = arith.constant 0 : i32
      %c0_i32_10 = arith.constant 0 : i32
      %11 = tpu.memref_slice %arg3[%10, %c0_i32_10] : memref<8192x128xf32, #tpu.memory_space<any>> -> memref<1x128xf32, #tpu.memory_space<any>>
      %c0_i32_11 = arith.constant 0 : i32
      %c0_i32_12 = arith.constant 0 : i32
      %12 = tpu.memref_slice %arg13[%c0_i32_11, %c0_i32_12] : memref<8x128xf32, #tpu.memory_space<vmem>> -> memref<1x128xf32, #tpu.memory_space<vmem>>
      %13 = tpu.memref_slice %arg15[%c0_i32_9] : memref<8x!tpu.dma_semaphore, #tpu.memory_space<semaphore_mem>> -> memref<1x!tpu.dma_semaphore, #tpu.memory_space<semaphore_mem>>
      %14 = tpu.memref_squeeze %13 : memref<1x!tpu.dma_semaphore, #tpu.memory_space<semaphore_mem>> -> memref<!tpu.dma_semaphore, #tpu.memory_space<semaphore_mem>>
      tpu.enqueue_dma source(%11 : memref<1x128xf32, #tpu.memory_space<any>>) target(%12 : memref<1x128xf32, #tpu.memory_space<vmem>>) target_semaphore(%14 : memref<!tpu.dma_semaphore, #tpu.memory_space<semaphore_mem>>)
      %c1 = arith.constant 1 : index
      %15 = memref.load %arg2[%c1] : memref<8xi32, #tpu.memory_space<smem>>
      %c1_i32 = arith.constant 1 : i32
      %c0_i32_13 = arith.constant 0 : i32
      %16 = tpu.memref_slice %arg3[%15, %c0_i32_13] : memref<8192x128xf32, #tpu.memory_space<any>> -> memref<1x128xf32, #tpu.memory_space<any>>
      %c1_i32_14 = arith.constant 1 : i32
      %c0_i32_15 = arith.constant 0 : i32
      %17 = tpu.memref_slice %arg13[%c1_i32_14, %c0_i32_15] : memref<8x128xf32, #tpu.memory_space<vmem>> -> memref<1x128xf32, #tpu.memory_space<vmem>>
      %18 = tpu.memref_slice %arg15[%c1_i32] : memref<8x!tpu.dma_semaphore, #tpu.memory_space<semaphore_mem>> -> memref<1x!tpu.dma_semaphore, #tpu.memory_space<semaphore_mem>>
      %19 = tpu.memref_squeeze %18 : memref<1x!tpu.dma_semaphore, #tpu.memory_space<semaphore_mem>> -> memref<!tpu.dma_semaphore, #tpu.memory_space<semaphore_mem>>
      tpu.enqueue_dma source(%16 : memref<1x128xf32, #tpu.memory_space<any>>) target(%17 : memref<1x128xf32, #tpu.memory_space<vmem>>) target_semaphore(%19 : memref<!tpu.dma_semaphore, #tpu.memory_space<semaphore_mem>>)
      %c2 = arith.constant 2 : index
      %20 = memref.load %arg2[%c2] : memref<8xi32, #tpu.memory_space<smem>>
      %c2_i32 = arith.constant 2 : i32
      %c0_i32_16 = arith.constant 0 : i32
      %21 = tpu.memref_slice %arg3[%20, %c0_i32_16] : memref<8192x128xf32, #tpu.memory_space<any>> -> memref<1x128xf32, #tpu.memory_space<any>>
      %c2_i32_17 = arith.constant 2 : i32
      %c0_i32_18 = arith.constant 0 : i32
      %22 = tpu.memref_slice %arg13[%c2_i32_17, %c0_i32_18] : memref<8x128xf32, #tpu.memory_space<vmem>> -> memref<1x128xf32, #tpu.memory_space<vmem>>
      %23 = tpu.memref_slice %arg15[%c2_i32] : memref<8x!tpu.dma_semaphore, #tpu.memory_space<semaphore_mem>> -> memref<1x!tpu.dma_semaphore, #tpu.memory_space<semaphore_mem>>
      %24 = tpu.memref_squeeze %23 : memref<1x!tpu.dma_semaphore, #tpu.memory_space<semaphore_mem>> -> memref<!tpu.dma_semaphore, #tpu.memory_space<semaphore_mem>>
      tpu.enqueue_dma source(%21 : memref<1x128xf32, #tpu.memory_space<any>>) target(%22 : memref<1x128xf32, #tpu.memory_space<vmem>>) target_semaphore(%24 : memref<!tpu.dma_semaphore, #tpu.memory_space<semaphore_mem>>)
      %c3 = arith.constant 3 : index
      %25 = memref.load %arg2[%c3] : memref<8xi32, #tpu.memory_space<smem>>
      %c3_i32 = arith.constant 3 : i32
      %c0_i32_19 = arith.constant 0 : i32
      %26 = tpu.memref_slice %arg3[%25, %c0_i32_19] : memref<8192x128xf32, #tpu.memory_space<any>> -> memref<1x128xf32, #tpu.memory_space<any>>
      %c3_i32_20 = arith.constant 3 : i32
      %c0_i32_21 = arith.constant 0 : i32
      %27 = tpu.memref_slice %arg13[%c3_i32_20, %c0_i32_21] : memref<8x128xf32, #tpu.memory_space<vmem>> -> memref<1x128xf32, #tpu.memory_space<vmem>>
      %28 = tpu.memref_slice %arg15[%c3_i32] : memref<8x!tpu.dma_semaphore, #tpu.memory_space<semaphore_mem>> -> memref<1x!tpu.dma_semaphore, #tpu.memory_space<semaphore_mem>>
      %29 = tpu.memref_squeeze %28 : memref<1x!tpu.dma_semaphore, #tpu.memory_space<semaphore_mem>> -> memref<!tpu.dma_semaphore, #tpu.memory_space<semaphore_mem>>
      tpu.enqueue_dma source(%26 : memref<1x128xf32, #tpu.memory_space<any>>) target(%27 : memref<1x128xf32, #tpu.memory_space<vmem>>) target_semaphore(%29 : memref<!tpu.dma_semaphore, #tpu.memory_space<semaphore_mem>>)
      %c4 = arith.constant 4 : index
      %30 = memref.load %arg2[%c4] : memref<8xi32, #tpu.memory_space<smem>>
      %c4_i32 = arith.constant 4 : i32
      %c0_i32_22 = arith.constant 0 : i32
      %31 = tpu.memref_slice %arg3[%30, %c0_i32_22] : memref<8192x128xf32, #tpu.memory_space<any>> -> memref<1x128xf32, #tpu.memory_space<any>>
      %c4_i32_23 = arith.constant 4 : i32
      %c0_i32_24 = arith.constant 0 : i32
      %32 = tpu.memref_slice %arg13[%c4_i32_23, %c0_i32_24] : memref<8x128xf32, #tpu.memory_space<vmem>> -> memref<1x128xf32, #tpu.memory_space<vmem>>
      %33 = tpu.memref_slice %arg15[%c4_i32] : memref<8x!tpu.dma_semaphore, #tpu.memory_space<semaphore_mem>> -> memref<1x!tpu.dma_semaphore, #tpu.memory_space<semaphore_mem>>
      %34 = tpu.memref_squeeze %33 : memref<1x!tpu.dma_semaphore, #tpu.memory_space<semaphore_mem>> -> memref<!tpu.dma_semaphore, #tpu.memory_space<semaphore_mem>>
      tpu.enqueue_dma source(%31 : memref<1x128xf32, #tpu.memory_space<any>>) target(%32 : memref<1x128xf32, #tpu.memory_space<vmem>>) target_semaphore(%34 : memref<!tpu.dma_semaphore, #tpu.memory_space<semaphore_mem>>)
      %c5 = arith.constant 5 : index
      %35 = memref.load %arg2[%c5] : memref<8xi32, #tpu.memory_space<smem>>
      %c5_i32 = arith.constant 5 : i32
      %c0_i32_25 = arith.constant 0 : i32
      %36 = tpu.memref_slice %arg3[%35, %c0_i32_25] : memref<8192x128xf32, #tpu.memory_space<any>> -> memref<1x128xf32, #tpu.memory_space<any>>
      %c5_i32_26 = arith.constant 5 : i32
      %c0_i32_27 = arith.constant 0 : i32
      %37 = tpu.memref_slice %arg13[%c5_i32_26, %c0_i32_27] : memref<8x128xf32, #tpu.memory_space<vmem>> -> memref<1x128xf32, #tpu.memory_space<vmem>>
      %38 = tpu.memref_slice %arg15[%c5_i32] : memref<8x!tpu.dma_semaphore, #tpu.memory_space<semaphore_mem>> -> memref<1x!tpu.dma_semaphore, #tpu.memory_space<semaphore_mem>>
      %39 = tpu.memref_squeeze %38 : memref<1x!tpu.dma_semaphore, #tpu.memory_space<semaphore_mem>> -> memref<!tpu.dma_semaphore, #tpu.memory_space<semaphore_mem>>
      tpu.enqueue_dma source(%36 : memref<1x128xf32, #tpu.memory_space<any>>) target(%37 : memref<1x128xf32, #tpu.memory_space<vmem>>) target_semaphore(%39 : memref<!tpu.dma_semaphore, #tpu.memory_space<semaphore_mem>>)
      %c6 = arith.constant 6 : index
      %40 = memref.load %arg2[%c6] : memref<8xi32, #tpu.memory_space<smem>>
      %c6_i32 = arith.constant 6 : i32
      %c0_i32_28 = arith.constant 0 : i32
      %41 = tpu.memref_slice %arg3[%40, %c0_i32_28] : memref<8192x128xf32, #tpu.memory_space<any>> -> memref<1x128xf32, #tpu.memory_space<any>>
      %c6_i32_29 = arith.constant 6 : i32
      %c0_i32_30 = arith.constant 0 : i32
      %42 = tpu.memref_slice %arg13[%c6_i32_29, %c0_i32_30] : memref<8x128xf32, #tpu.memory_space<vmem>> -> memref<1x128xf32, #tpu.memory_space<vmem>>
      %43 = tpu.memref_slice %arg15[%c6_i32] : memref<8x!tpu.dma_semaphore, #tpu.memory_space<semaphore_mem>> -> memref<1x!tpu.dma_semaphore, #tpu.memory_space<semaphore_mem>>
      %44 = tpu.memref_squeeze %43 : memref<1x!tpu.dma_semaphore, #tpu.memory_space<semaphore_mem>> -> memref<!tpu.dma_semaphore, #tpu.memory_space<semaphore_mem>>
      tpu.enqueue_dma source(%41 : memref<1x128xf32, #tpu.memory_space<any>>) target(%42 : memref<1x128xf32, #tpu.memory_space<vmem>>) target_semaphore(%44 : memref<!tpu.dma_semaphore, #tpu.memory_space<semaphore_mem>>)
      %c7 = arith.constant 7 : index
      %45 = memref.load %arg2[%c7] : memref<8xi32, #tpu.memory_space<smem>>
      %c7_i32 = arith.constant 7 : i32
      %c0_i32_31 = arith.constant 0 : i32
      %46 = tpu.memref_slice %arg3[%45, %c0_i32_31] : memref<8192x128xf32, #tpu.memory_space<any>> -> memref<1x128xf32, #tpu.memory_space<any>>
      %c7_i32_32 = arith.constant 7 : i32
      %c0_i32_33 = arith.constant 0 : i32
      %47 = tpu.memref_slice %arg13[%c7_i32_32, %c0_i32_33] : memref<8x128xf32, #tpu.memory_space<vmem>> -> memref<1x128xf32, #tpu.memory_space<vmem>>
      %48 = tpu.memref_slice %arg15[%c7_i32] : memref<8x!tpu.dma_semaphore, #tpu.memory_space<semaphore_mem>> -> memref<1x!tpu.dma_semaphore, #tpu.memory_space<semaphore_mem>>
      %49 = tpu.memref_squeeze %48 : memref<1x!tpu.dma_semaphore, #tpu.memory_space<semaphore_mem>> -> memref<!tpu.dma_semaphore, #tpu.memory_space<semaphore_mem>>
      tpu.enqueue_dma source(%46 : memref<1x128xf32, #tpu.memory_space<any>>) target(%47 : memref<1x128xf32, #tpu.memory_space<vmem>>) target_semaphore(%49 : memref<!tpu.dma_semaphore, #tpu.memory_space<semaphore_mem>>)
      %c0_34 = arith.constant 0 : index
      %c0_35 = arith.constant 0 : index
      %50 = vector.load %arg4[%c0_34, %c0_35] : memref<8x128xf32, #tpu.memory_space<vmem>>, vector<8x128xf32>
      %51 = arith.truncf %50 : vector<8x128xf32> to vector<8x128xbf16>
      %c0_36 = arith.constant 0 : index
      %c0_37 = arith.constant 0 : index
      %52 = vector.load %arg6[%c0_36, %c0_37] : memref<128x384xbf16, #tpu.memory_space<vmem>>, vector<128x384xbf16>
      %cst_38 = arith.constant dense<0.000000e+00> : vector<8x384xf32>
      %53 = tpu.matmul %51, %52, %cst_38 {dimension_numbers = #tpu.dot_dimension_numbers<[1], [0], [0], [1], [0, 0, 1, 1], [], []>} : vector<8x128xbf16>, vector<128x384xbf16>, vector<8x384xf32> -> vector<8x384xf32>
      %c0_39 = arith.constant 0 : index
      %c0_40 = arith.constant 0 : index
      %54 = vector.load %arg8[%c0_39, %c0_40] : memref<1x384xf32, #tpu.memory_space<vmem>>, vector<1x384xf32>
      %55 = vector.broadcast %54 : vector<1x384xf32> to vector<8x384xf32>
      %56 = arith.addf %53, %55 : vector<8x384xf32>
      %c0_i32_41 = arith.constant 0 : i32
      %c0_i32_42 = arith.constant 0 : i32
      %57 = tpu.memref_slice %arg3[%10, %c0_i32_42] : memref<8192x128xf32, #tpu.memory_space<any>> -> memref<1x128xf32, #tpu.memory_space<any>>
      %c0_i32_43 = arith.constant 0 : i32
      %c0_i32_44 = arith.constant 0 : i32
      %58 = tpu.memref_slice %arg13[%c0_i32_43, %c0_i32_44] : memref<8x128xf32, #tpu.memory_space<vmem>> -> memref<1x128xf32, #tpu.memory_space<vmem>>
      %59 = tpu.memref_slice %arg15[%c0_i32_41] : memref<8x!tpu.dma_semaphore, #tpu.memory_space<semaphore_mem>> -> memref<1x!tpu.dma_semaphore, #tpu.memory_space<semaphore_mem>>
      %60 = tpu.memref_squeeze %59 : memref<1x!tpu.dma_semaphore, #tpu.memory_space<semaphore_mem>> -> memref<!tpu.dma_semaphore, #tpu.memory_space<semaphore_mem>>
      tpu.wait_dma2 semaphore(%60 : memref<!tpu.dma_semaphore, #tpu.memory_space<semaphore_mem>>) src(%57 : memref<1x128xf32, #tpu.memory_space<any>>) dst(%58 : memref<1x128xf32, #tpu.memory_space<vmem>>)
      %c1_i32_45 = arith.constant 1 : i32
      %c0_i32_46 = arith.constant 0 : i32
      %61 = tpu.memref_slice %arg3[%15, %c0_i32_46] : memref<8192x128xf32, #tpu.memory_space<any>> -> memref<1x128xf32, #tpu.memory_space<any>>
      %c1_i32_47 = arith.constant 1 : i32
      %c0_i32_48 = arith.constant 0 : i32
      %62 = tpu.memref_slice %arg13[%c1_i32_47, %c0_i32_48] : memref<8x128xf32, #tpu.memory_space<vmem>> -> memref<1x128xf32, #tpu.memory_space<vmem>>
      %63 = tpu.memref_slice %arg15[%c1_i32_45] : memref<8x!tpu.dma_semaphore, #tpu.memory_space<semaphore_mem>> -> memref<1x!tpu.dma_semaphore, #tpu.memory_space<semaphore_mem>>
      %64 = tpu.memref_squeeze %63 : memref<1x!tpu.dma_semaphore, #tpu.memory_space<semaphore_mem>> -> memref<!tpu.dma_semaphore, #tpu.memory_space<semaphore_mem>>
      tpu.wait_dma2 semaphore(%64 : memref<!tpu.dma_semaphore, #tpu.memory_space<semaphore_mem>>) src(%61 : memref<1x128xf32, #tpu.memory_space<any>>) dst(%62 : memref<1x128xf32, #tpu.memory_space<vmem>>)
      %c2_i32_49 = arith.constant 2 : i32
      %c0_i32_50 = arith.constant 0 : i32
      %65 = tpu.memref_slice %arg3[%20, %c0_i32_50] : memref<8192x128xf32, #tpu.memory_space<any>> -> memref<1x128xf32, #tpu.memory_space<any>>
      %c2_i32_51 = arith.constant 2 : i32
      %c0_i32_52 = arith.constant 0 : i32
      %66 = tpu.memref_slice %arg13[%c2_i32_51, %c0_i32_52] : memref<8x128xf32, #tpu.memory_space<vmem>> -> memref<1x128xf32, #tpu.memory_space<vmem>>
      %67 = tpu.memref_slice %arg15[%c2_i32_49] : memref<8x!tpu.dma_semaphore, #tpu.memory_space<semaphore_mem>> -> memref<1x!tpu.dma_semaphore, #tpu.memory_space<semaphore_mem>>
      %68 = tpu.memref_squeeze %67 : memref<1x!tpu.dma_semaphore, #tpu.memory_space<semaphore_mem>> -> memref<!tpu.dma_semaphore, #tpu.memory_space<semaphore_mem>>
      tpu.wait_dma2 semaphore(%68 : memref<!tpu.dma_semaphore, #tpu.memory_space<semaphore_mem>>) src(%65 : memref<1x128xf32, #tpu.memory_space<any>>) dst(%66 : memref<1x128xf32, #tpu.memory_space<vmem>>)
      %c3_i32_53 = arith.constant 3 : i32
      %c0_i32_54 = arith.constant 0 : i32
      %69 = tpu.memref_slice %arg3[%25, %c0_i32_54] : memref<8192x128xf32, #tpu.memory_space<any>> -> memref<1x128xf32, #tpu.memory_space<any>>
      %c3_i32_55 = arith.constant 3 : i32
      %c0_i32_56 = arith.constant 0 : i32
      %70 = tpu.memref_slice %arg13[%c3_i32_55, %c0_i32_56] : memref<8x128xf32, #tpu.memory_space<vmem>> -> memref<1x128xf32, #tpu.memory_space<vmem>>
      %71 = tpu.memref_slice %arg15[%c3_i32_53] : memref<8x!tpu.dma_semaphore, #tpu.memory_space<semaphore_mem>> -> memref<1x!tpu.dma_semaphore, #tpu.memory_space<semaphore_mem>>
      %72 = tpu.memref_squeeze %71 : memref<1x!tpu.dma_semaphore, #tpu.memory_space<semaphore_mem>> -> memref<!tpu.dma_semaphore, #tpu.memory_space<semaphore_mem>>
      tpu.wait_dma2 semaphore(%72 : memref<!tpu.dma_semaphore, #tpu.memory_space<semaphore_mem>>) src(%69 : memref<1x128xf32, #tpu.memory_space<any>>) dst(%70 : memref<1x128xf32, #tpu.memory_space<vmem>>)
      %c4_i32_57 = arith.constant 4 : i32
      %c0_i32_58 = arith.constant 0 : i32
      %73 = tpu.memref_slice %arg3[%30, %c0_i32_58] : memref<8192x128xf32, #tpu.memory_space<any>> -> memref<1x128xf32, #tpu.memory_space<any>>
      %c4_i32_59 = arith.constant 4 : i32
      %c0_i32_60 = arith.constant 0 : i32
      %74 = tpu.memref_slice %arg13[%c4_i32_59, %c0_i32_60] : memref<8x128xf32, #tpu.memory_space<vmem>> -> memref<1x128xf32, #tpu.memory_space<vmem>>
      %75 = tpu.memref_slice %arg15[%c4_i32_57] : memref<8x!tpu.dma_semaphore, #tpu.memory_space<semaphore_mem>> -> memref<1x!tpu.dma_semaphore, #tpu.memory_space<semaphore_mem>>
      %76 = tpu.memref_squeeze %75 : memref<1x!tpu.dma_semaphore, #tpu.memory_space<semaphore_mem>> -> memref<!tpu.dma_semaphore, #tpu.memory_space<semaphore_mem>>
      tpu.wait_dma2 semaphore(%76 : memref<!tpu.dma_semaphore, #tpu.memory_space<semaphore_mem>>) src(%73 : memref<1x128xf32, #tpu.memory_space<any>>) dst(%74 : memref<1x128xf32, #tpu.memory_space<vmem>>)
      %c5_i32_61 = arith.constant 5 : i32
      %c0_i32_62 = arith.constant 0 : i32
      %77 = tpu.memref_slice %arg3[%35, %c0_i32_62] : memref<8192x128xf32, #tpu.memory_space<any>> -> memref<1x128xf32, #tpu.memory_space<any>>
      %c5_i32_63 = arith.constant 5 : i32
      %c0_i32_64 = arith.constant 0 : i32
      %78 = tpu.memref_slice %arg13[%c5_i32_63, %c0_i32_64] : memref<8x128xf32, #tpu.memory_space<vmem>> -> memref<1x128xf32, #tpu.memory_space<vmem>>
      %79 = tpu.memref_slice %arg15[%c5_i32_61] : memref<8x!tpu.dma_semaphore, #tpu.memory_space<semaphore_mem>> -> memref<1x!tpu.dma_semaphore, #tpu.memory_space<semaphore_mem>>
      %80 = tpu.memref_squeeze %79 : memref<1x!tpu.dma_semaphore, #tpu.memory_space<semaphore_mem>> -> memref<!tpu.dma_semaphore, #tpu.memory_space<semaphore_mem>>
      tpu.wait_dma2 semaphore(%80 : memref<!tpu.dma_semaphore, #tpu.memory_space<semaphore_mem>>) src(%77 : memref<1x128xf32, #tpu.memory_space<any>>) dst(%78 : memref<1x128xf32, #tpu.memory_space<vmem>>)
      %c6_i32_65 = arith.constant 6 : i32
      %c0_i32_66 = arith.constant 0 : i32
      %81 = tpu.memref_slice %arg3[%40, %c0_i32_66] : memref<8192x128xf32, #tpu.memory_space<any>> -> memref<1x128xf32, #tpu.memory_space<any>>
      %c6_i32_67 = arith.constant 6 : i32
      %c0_i32_68 = arith.constant 0 : i32
      %82 = tpu.memref_slice %arg13[%c6_i32_67, %c0_i32_68] : memref<8x128xf32, #tpu.memory_space<vmem>> -> memref<1x128xf32, #tpu.memory_space<vmem>>
      %83 = tpu.memref_slice %arg15[%c6_i32_65] : memref<8x!tpu.dma_semaphore, #tpu.memory_space<semaphore_mem>> -> memref<1x!tpu.dma_semaphore, #tpu.memory_space<semaphore_mem>>
      %84 = tpu.memref_squeeze %83 : memref<1x!tpu.dma_semaphore, #tpu.memory_space<semaphore_mem>> -> memref<!tpu.dma_semaphore, #tpu.memory_space<semaphore_mem>>
      tpu.wait_dma2 semaphore(%84 : memref<!tpu.dma_semaphore, #tpu.memory_space<semaphore_mem>>) src(%81 : memref<1x128xf32, #tpu.memory_space<any>>) dst(%82 : memref<1x128xf32, #tpu.memory_space<vmem>>)
      %c7_i32_69 = arith.constant 7 : i32
      %c0_i32_70 = arith.constant 0 : i32
      %85 = tpu.memref_slice %arg3[%45, %c0_i32_70] : memref<8192x128xf32, #tpu.memory_space<any>> -> memref<1x128xf32, #tpu.memory_space<any>>
      %c7_i32_71 = arith.constant 7 : i32
      %c0_i32_72 = arith.constant 0 : i32
      %86 = tpu.memref_slice %arg13[%c7_i32_71, %c0_i32_72] : memref<8x128xf32, #tpu.memory_space<vmem>> -> memref<1x128xf32, #tpu.memory_space<vmem>>
      %87 = tpu.memref_slice %arg15[%c7_i32_69] : memref<8x!tpu.dma_semaphore, #tpu.memory_space<semaphore_mem>> -> memref<1x!tpu.dma_semaphore, #tpu.memory_space<semaphore_mem>>
      %88 = tpu.memref_squeeze %87 : memref<1x!tpu.dma_semaphore, #tpu.memory_space<semaphore_mem>> -> memref<!tpu.dma_semaphore, #tpu.memory_space<semaphore_mem>>
      tpu.wait_dma2 semaphore(%88 : memref<!tpu.dma_semaphore, #tpu.memory_space<semaphore_mem>>) src(%85 : memref<1x128xf32, #tpu.memory_space<any>>) dst(%86 : memref<1x128xf32, #tpu.memory_space<vmem>>)
      %c0_73 = arith.constant 0 : index
      %c0_74 = arith.constant 0 : index
      %89 = vector.load %arg13[%c0_73, %c0_74] : memref<8x128xf32, #tpu.memory_space<vmem>>, vector<8x128xf32>
      %90 = arith.truncf %89 : vector<8x128xf32> to vector<8x128xbf16>
      %c0_75 = arith.constant 0 : index
      %c0_76 = arith.constant 0 : index
      %91 = vector.load %arg5[%c0_75, %c0_76] : memref<128x384xbf16, #tpu.memory_space<vmem>>, vector<128x384xbf16>
      %cst_77 = arith.constant dense<0.000000e+00> : vector<8x384xf32>
      %92 = tpu.matmul %90, %91, %cst_77 {dimension_numbers = #tpu.dot_dimension_numbers<[1], [0], [0], [1], [0, 0, 1, 1], [], []>} : vector<8x128xbf16>, vector<128x384xbf16>, vector<8x384xf32> -> vector<8x384xf32>
      %c0_78 = arith.constant 0 : index
      %c0_79 = arith.constant 0 : index
      %93 = vector.load %arg7[%c0_78, %c0_79] : memref<1x384xf32, #tpu.memory_space<vmem>>, vector<1x384xf32>
      %94 = vector.broadcast %93 : vector<1x384xf32> to vector<8x384xf32>
      %95 = arith.addf %92, %94 : vector<8x384xf32>
      %96 = vector.extract_strided_slice %95 {offsets = [0, 0], sizes = [8, 128], strides = [1, 1]} : vector<8x384xf32> to vector<8x128xf32>
      %97 = vector.extract_strided_slice %56 {offsets = [0, 0], sizes = [8, 128], strides = [1, 1]} : vector<8x384xf32> to vector<8x128xf32>
      %98 = arith.addf %96, %97 : vector<8x128xf32>
      %99 = arith.negf %98 : vector<8x128xf32>
      %100 = math.exp %99 : vector<8x128xf32>
      %cst_80 = arith.constant 1.000000e+00 : f32
      %101 = vector.broadcast %cst_80 : f32 to vector<8x128xf32>
      %102 = arith.addf %101, %100 : vector<8x128xf32>
      %103 = arith.divf %101, %102 : vector<8x128xf32>
      %104 = vector.extract_strided_slice %95 {offsets = [0, 128], sizes = [8, 128], strides = [1, 1]} : vector<8x384xf32> to vector<8x128xf32>
      %105 = vector.extract_strided_slice %56 {offsets = [0, 128], sizes = [8, 128], strides = [1, 1]} : vector<8x384xf32> to vector<8x128xf32>
      %106 = arith.addf %104, %105 : vector<8x128xf32>
      %107 = arith.negf %106 : vector<8x128xf32>
      %108 = math.exp %107 : vector<8x128xf32>
      %cst_81 = arith.constant 1.000000e+00 : f32
      %109 = vector.broadcast %cst_81 : f32 to vector<8x128xf32>
      %110 = arith.addf %109, %108 : vector<8x128xf32>
      %111 = arith.divf %109, %110 : vector<8x128xf32>
      %112 = vector.extract_strided_slice %95 {offsets = [0, 256], sizes = [8, 128], strides = [1, 1]} : vector<8x384xf32> to vector<8x128xf32>
      %113 = vector.extract_strided_slice %56 {offsets = [0, 256], sizes = [8, 128], strides = [1, 1]} : vector<8x384xf32> to vector<8x128xf32>
      %114 = arith.mulf %103, %113 : vector<8x128xf32>
      %115 = arith.addf %112, %114 : vector<8x128xf32>
      %116 = math.tanh %115 : vector<8x128xf32>
      %cst_82 = arith.constant 1.000000e+00 : f32
      %117 = vector.broadcast %cst_82 : f32 to vector<8x128xf32>
      %118 = arith.subf %117, %111 : vector<8x128xf32>
      %119 = arith.mulf %118, %116 : vector<8x128xf32>
      %120 = arith.mulf %111, %50 : vector<8x128xf32>
      %121 = arith.addf %119, %120 : vector<8x128xf32>
      %c0_83 = arith.constant 0 : index
      %c0_84 = arith.constant 0 : index
      %c0_85 = arith.constant 0 : index
      %122 = vector.load %arg12[%c0_83, %c0_84, %c0_85] : memref<1x8x128xf32, #tpu.memory_space<vmem>>, vector<1x8x128xf32>
      %123 = vector.shape_cast %122 : vector<1x8x128xf32> to vector<8x128xf32>
      %124 = vector.shape_cast %121 : vector<8x128xf32> to vector<1x8x128xf32>
      tpu.vector_store %arg12[%c0_83, %c0_84, %c0_85], %124 {strides = array<i32>} : memref<1x8x128xf32, #tpu.memory_space<vmem>>, vector<1x8x128xf32>,
      %125 = arith.truncf %121 : vector<8x128xf32> to vector<8x128xbf16>
      %c0_86 = arith.constant 0 : index
      %c0_87 = arith.constant 0 : index
      %126 = vector.load %arg14[%c0_86, %c0_87] : memref<8x128xbf16, #tpu.memory_space<vmem>>, vector<8x128xbf16>
      tpu.vector_store %arg14[%c0_86, %c0_87], %125 {strides = array<i32>} : memref<8x128xbf16, #tpu.memory_space<vmem>>, vector<8x128xbf16>,
    } else {
    }
    %c0 = arith.constant 0 : index
    %c0_1 = arith.constant 0 : index
    %3 = vector.load %arg14[%c0, %c0_1] : memref<8x128xbf16, #tpu.memory_space<vmem>>, vector<8x128xbf16>
    %c0_2 = arith.constant 0 : index
    %c0_3 = arith.constant 0 : index
    %4 = vector.load %arg9[%c0_2, %c0_3] : memref<128x2048xbf16, #tpu.memory_space<vmem>>, vector<128x2048xbf16>
    %cst = arith.constant dense<0.000000e+00> : vector<8x2048xf32>
    %5 = tpu.matmul %3, %4, %cst {dimension_numbers = #tpu.dot_dimension_numbers<[1], [0], [0], [1], [0, 0, 1, 1], [], []>} : vector<8x128xbf16>, vector<128x2048xbf16>, vector<8x2048xf32> -> vector<8x2048xf32>
    %c0_4 = arith.constant 0 : index
    %c0_5 = arith.constant 0 : index
    %6 = vector.load %arg10[%c0_4, %c0_5] : memref<1x2048xf32, #tpu.memory_space<vmem>>, vector<1x2048xf32>
    %7 = vector.broadcast %6 : vector<1x2048xf32> to vector<8x2048xf32>
    %8 = arith.addf %5, %7 : vector<8x2048xf32>
    %c0_6 = arith.constant 0 : index
    %c0_7 = arith.constant 0 : index
    %9 = vector.load %arg11[%c0_6, %c0_7] : memref<8x2048xf32, #tpu.memory_space<vmem>>, vector<8x2048xf32>
    tpu.vector_store %arg11[%c0_6, %c0_7], %8 {strides = array<i32>} : memref<8x2048xf32, #tpu.memory_space<vmem>>, vector<8x2048xf32>,
    return
  }
  func.func @transform_0(%arg0: i32, %arg1: i32) -> i32 {
    %c0_i32 = arith.constant 0 : i32
    %c0_i32_0 = arith.constant 0 : i32
    return %c0_i32 : i32
  }
  func.func @transform_2(%arg0: i32, %arg1: i32) -> (i32, i32) {
    %c0_i32 = arith.constant 0 : i32
    %c0_i32_0 = arith.constant 0 : i32
    %c0_i32_1 = arith.constant 0 : i32
    return %c0_i32, %c0_i32_0 : i32, i32
  }
  func.func @transform_3(%arg0: i32, %arg1: i32) -> (i32, i32) {
    %c0_i32 = arith.constant 0 : i32
    %c0_i32_0 = arith.constant 0 : i32
    %c0_i32_1 = arith.constant 0 : i32
    return %c0_i32, %c0_i32_0 : i32, i32
  }
  func.func @transform_4(%arg0: i32, %arg1: i32) -> (i32, i32) {
    %c0_i32 = arith.constant 0 : i32
    %c0_i32_0 = arith.constant 0 : i32
    %c0_i32_1 = arith.constant 0 : i32
    return %c0_i32, %c0_i32_0 : i32, i32
  }
  func.func @transform_5(%arg0: i32, %arg1: i32) -> (i32, i32) {
    %c0_i32 = arith.constant 0 : i32
    %c0_i32_0 = arith.constant 0 : i32
    %c0_i32_1 = arith.constant 0 : i32
    return %c0_i32, %c0_i32_0 : i32, i32
  }
  func.func @transform_6(%arg0: i32, %arg1: i32) -> (i32, i32) {
    %c0_i32 = arith.constant 0 : i32
    %c0_i32_0 = arith.constant 0 : i32
    %c0_i32_1 = arith.constant 0 : i32
    return %c0_i32, %c0_i32_0 : i32, i32
  }
  func.func @transform_7(%arg0: i32, %arg1: i32) -> (i32, i32) {
    %c2_i32 = arith.constant 2 : i32
    %0 = arith.muli %arg0, %c2_i32 : i32
    %1 = arith.addi %0, %arg1 : i32
    %c0_i32 = arith.constant 0 : i32
    %c0_i32_0 = arith.constant 0 : i32
    return %c0_i32, %1 : i32, i32
  }
  func.func @transform_8(%arg0: i32, %arg1: i32) -> (i32, i32) {
    %c2_i32 = arith.constant 2 : i32
    %0 = arith.muli %arg0, %c2_i32 : i32
    %1 = arith.addi %0, %arg1 : i32
    %c0_i32 = arith.constant 0 : i32
    %c0_i32_0 = arith.constant 0 : i32
    return %c0_i32, %1 : i32, i32
  }
  func.func @transform_9(%arg0: i32, %arg1: i32) -> (i32, i32) {
    %c2_i32 = arith.constant 2 : i32
    %0 = arith.muli %arg0, %c2_i32 : i32
    %1 = arith.addi %0, %arg1 : i32
    %c0_i32 = arith.constant 0 : i32
    %c0_i32_0 = arith.constant 0 : i32
    return %c0_i32, %1 : i32, i32
  }
  func.func @transform_10(%arg0: i32, %arg1: i32) -> (i32, i32, i32) {
    %c0_i32 = arith.constant 0 : i32
    %c0_i32_0 = arith.constant 0 : i32
    %c0_i32_1 = arith.constant 0 : i32
    return %arg0, %c0_i32, %c0_i32_0 : i32, i32, i32
  }
}

</mosaic_0001>

<llo_original>
// kernel: decoder_rnn_forward.1
$region0: #{decoder_rnn_forward.1}
  #allocation0 [shape = 'u32[]', space=smem, size = 0x4, offset = 0x4, fixed_abs, tag = 'smem constant byte address 0x4 - core index']
  #allocation1 [shape = 'u32[144,128]{1,0:T(1,128)}', space=vmem, size = 0x12000, scoped, tag = 'internal scratch']
  #allocation2 [shape = 'f32[8,128]{1,0:T(8,128)}', space=vmem, size = 0x1000, scoped, tag = 'scratch operand']
  #allocation3 [shape = 'bf16[8,128]{1,0:T(8,128)(2,1)}', space=vmem, size = 0x800, scoped, tag = 'scratch operand']
  #allocation4 [shape = 's32[8]{0}', space=sflag, size = 0x20, scoped, tag = 'scratch operand']
  #allocation20 [shape = 's32[]', space=sflag, size = 0x4, offset = 0, fixed_abs, tag = 'sflag constant byte address 0x0 - dummy sync flag']
  #allocation21 [shape = 's32[]', space=sflag, size = 0x4, offset = 0, fixed_abs, tag = 'sflag constant byte address 0x0 - dummy sync flag']
  #allocation22 [shape = 'u32[]', space=smem, size = 0x4, offset = 0x44, fixed_abs, tag = 'smem constant byte address 0x44 - assertion arg 0']
  #allocation23 [shape = 'u32[]', space=smem, size = 0x4, offset = 0x48, fixed_abs, tag = 'smem constant byte address 0x48 - assertion arg 1']
  #allocation24 [shape = 's32[]', space=sflag, size = 0x4, offset = 0, fixed_abs, tag = 'sflag constant byte address 0x0 - dummy sync flag']
  #allocation25 [shape = 's32[]', space=sflag, size = 0x4, offset = 0, fixed_abs, tag = 'sflag constant byte address 0x0 - dummy sync flag']
  #allocation26 [shape = 's32[]', space=sflag, size = 0x4, offset = 0, fixed_abs, tag = 'sflag constant byte address 0x0 - dummy sync flag']
  #allocation27 [shape = 's32[]', space=sflag, size = 0x4, offset = 0, fixed_abs, tag = 'sflag constant byte address 0x0 - dummy sync flag']
  #allocation28 [shape = 's32[]', space=sflag, size = 0x4, offset = 0, fixed_abs, tag = 'sflag constant byte address 0x0 - dummy sync flag']
  #allocation29 [shape = 's32[]', space=sflag, size = 0x4, offset = 0, fixed_abs, tag = 'sflag constant byte address 0x0 - dummy sync flag']
  #allocation30 [shape = 's32[]', space=sflag, size = 0x4, offset = 0, fixed_abs, tag = 'sflag constant byte address 0x0 - dummy sync flag']
  #allocation31 [shape = 's32[]', space=sflag, size = 0x4, offset = 0, fixed_abs, tag = 'sflag constant byte address 0x0 - dummy sync flag']
  #allocation32 [shape = 's32[]', space=sflag, size = 0x4, offset = 0, fixed_abs, tag = 'sflag constant byte address 0x0 - dummy sync flag']
  #allocation33 [shape = 's32[]', space=sflag, size = 0x4, offset = 0, fixed_abs, tag = 'sflag constant byte address 0x0 - dummy sync flag']
  #allocation34 [shape = 's32[]', space=sflag, size = 0x4, offset = 0, fixed_abs, tag = 'sflag constant byte address 0x0 - dummy sync flag']
  #allocation35 [shape = 's32[]', space=sflag, size = 0x4, offset = 0, fixed_abs, tag = 'sflag constant byte address 0x0 - dummy sync flag']
  #allocation36 [shape = 's32[]', space=sflag, size = 0x4, offset = 0, fixed_abs, tag = 'sflag constant byte address 0x0 - dummy sync flag']
  #allocation37 [shape = 's32[]', space=sflag, size = 0x4, offset = 0, fixed_abs, tag = 'sflag constant byte address 0x0 - dummy sync flag']
  %s0 = inlined_call_operand.hbm [shape: s32[8], index: 0, kind: input, shape index: {}]
  %s1 = inlined_call_operand.hbm [shape: f32[8192,128], index: 1, kind: input, shape index: {}]
  %s2 = inlined_call_operand.hbm [shape: f32[8,128], index: 2, kind: input, shape index: {}]
  %s3 = inlined_call_operand.hbm [shape: bf16[128,384], index: 3, kind: input, shape index: {}]
  %s4 = inlined_call_operand.hbm [shape: bf16[128,384], index: 4, kind: input, shape index: {}]
  %s5 = inlined_call_operand.hbm [shape: f32[1,384], index: 5, kind: input, shape index: {}]
  %s6 = inlined_call_operand.hbm [shape: f32[1,384], index: 6, kind: input, shape index: {}]
  %s7 = inlined_call_operand.hbm [shape: bf16[128,8192], index: 7, kind: input, shape index: {}]
  %s8 = inlined_call_operand.hbm [shape: f32[1,8192], index: 8, kind: input, shape index: {}]
  %s9 = inlined_call_operand.hbm [shape: f32[8,8192], index: 9, kind: output, shape index: {0}]
  %s10 = inlined_call_operand.vmem [shape: f32[2,8,128], index: 10, kind: output, shape index: {1}]
  %11 = xla_tuple %s9, %s10
  %s12 = sld [smem:[#allocation0]]
  $region141: #{decoder_rnn_forward.1} parent=0
    _
  %s14 = ssub.s32 1, %s12
  %s15 = scalar_select 0, %s14, %s12
  $region1: #{decoder_rnn_forward.1} parent=0
    #allocation5 [shape = 'u8[512]{0}', space=smem, size = 0x200, scoped, tag = 'input window, operand 0, single buffered']
    #allocation6 [shape = 's32[2]{0}', space=sflag, size = 0x8, scoped, tag = 'scoped memory for decoder_rnn_forward.1']
    #allocation7 [shape = 's32[2]{0}', space=sflag, size = 0x8, scoped, tag = 'scoped memory for decoder_rnn_forward.1']
    #allocation8 [shape = 's32[2]{0}', space=sflag, size = 0x8, scoped, tag = 'scoped memory for decoder_rnn_forward.1']
    #allocation9 [shape = 'u8[4096]{0}', space=vmem, size = 0x1000, scoped, tag = 'input window, operand 2, single buffered']
    #allocation10 [shape = 'u8[98304]{0}', space=vmem, size = 0x18000, scoped, tag = 'input window, operand 3, single buffered']
    #allocation11 [shape = 's32[1]{0}', space=sflag, size = 0x4, scoped, tag = 'scoped memory for decoder_rnn_forward.1']
    #allocation12 [shape = 'u8[98304]{0}', space=vmem, size = 0x18000, scoped, tag = 'input window, operand 4, single buffered']
    #allocation13 [shape = 'u8[1536]{0}', space=vmem, size = 0x800, scoped, tag = 'input window, operand 5, single buffered']
    #allocation14 [shape = 's32[1]{0}', space=sflag, size = 0x4, scoped, tag = 'scoped memory for decoder_rnn_forward.1']
    #allocation15 [shape = 'u8[1536]{0}', space=vmem, size = 0x800, scoped, tag = 'input window, operand 6, single buffered']
    #allocation16 [shape = 'u8[1048576]{0}', space=vmem, size = 0x100000, scoped, tag = 'input window, operand 7']
    #allocation17 [shape = 's32[2]{0}', space=sflag, size = 0x8, scoped, tag = 'scoped memory for decoder_rnn_forward.1']
    #allocation18 [shape = 'u8[16384]{0}', space=vmem, size = 0x4000, scoped, tag = 'input window, operand 8']
    #allocation19 [shape = 'u8[131072]{0}', space=vmem, size = 0x20000, scoped, tag = 'output window, operand 0']
    %16 = vsyncpa [#allocation8], 0
    %17 = vsyncpa [#allocation6], 0
    %18 = vsyncpa [#allocation11], 0
    %19 = vsyncpa [#allocation14], 0
    %20 = vsyncpa [#allocation17], 0
    %s21 = scalar_lea.sflag [#allocation17], 1
    %22 = vsyncpa %s21, 0
    %23 = vsyncpa [#allocation7], 0
    %s24 = scalar_lea.sflag [#allocation7], 1
    %25 = vsyncpa %s24, 0
    loop: start=0, step=1, limit=6
    $region2: #{decoder_rnn_forward.1} parent=1 // loop_pre_header
      _
    $region3: #{decoder_rnn_forward.1} parent=1 // loop_header
      %s27 = sphi 0, %s31
      %p28 = scmp.ge.s32.totalorder %s27, 6
      %s34 = sphi 0, %s46
      %s35 = sphi 0, %s42
      %s36 = sphi 0, %s34
      %s37 = sphi 0, %s35
      %s38 = sphi 0, %s36
      %s39 = sphi 0, %s37
      %s47 = sphi 0, %s47
      %s49 = sphi 0, %s47
      %s50 = sphi 0, %s49
      %s64 = sphi 0, %s50
      %s68 = sphi 0, %s68
      %s70 = sphi 0, %s68
      %s71 = sphi 0, %s70
      %s85 = sphi 0, %s71
      %s89 = sphi 0, %s89
      %s91 = sphi 0, %s89
      %s92 = sphi 0, %s91
      %s106 = sphi 0, %s92
      %s110 = sphi 0, %s110
      %s112 = sphi 0, %s110
      %s113 = sphi 0, %s112
      %s127 = sphi 0, %s113
      %s131 = sphi 0, %s131
      %s133 = sphi 0, %s131
      %s134 = sphi 0, %s133
      %s148 = sphi 0, %s134
      %s152 = sphi 0, %s152
      %s154 = sphi 0, %s152
      %s155 = sphi 0, %s154
      %s169 = sphi 0, %s155
      %s179 = sphi 0, %s181
      %s182 = sphi 0, %s179
      %s183 = sphi 0, %s182
      %s199 = sphi 0, %s183
      %s209 = sphi 0, %s211
      %s212 = sphi 0, %s209
      %s213 = sphi 0, %s212
      %s229 = sphi 0, %s213
      %s239 = sphi 0, %s241
      %s242 = sphi 0, %s239
      %s243 = sphi 0, %s242
      %s259 = sphi 0, %s243
      %s265 = sphi 0, %s267
      %s268 = sphi 0, %s265
      %s269 = sphi 0, %s268
      %s285 = sphi 0, %s269
    $region4: #{decoder_rnn_forward.1} parent=1 // loop_header_branch
      %30 = sbr.rel (%p28) target = $region8
    $region5: #{decoder_rnn_forward.1} parent=1 // loop_body
      %s32 = ssub.s32 %s27, 1
      %s33 = ssub.s32 %s27, 2
      %s40 = sadd.s32 1, %s35
      %p41 = scmp.ge.s32.totalorder %s40, 2
      %s42 = scalar_select %p41, 0, %s40
      %s43 = sadd.s32 1, %s34
      %s44 = scalar_select %p41, %s43, %s34
      %p45 = scmp.ge.s32.totalorder %s44, 2
      %s46 = scalar_select %p45, 0, %s44
      %s48 = sadd.s32 %s47, 1
      %p51 = scmp.eq.s32.totalorder %s27, 3
      %p52 = scmp.ne.s32.totalorder %s47, %s49
      %p53 = scmp.eq.s32.totalorder %s27, 0
      %p54 = por %p52, %p53
      %p55 = scmp.ne.s32.totalorder %s47, %s49
      %p56 = scmp.eq.s32.totalorder %s32, 3
      %p57 = por %p55, %p56
      %p58 = scmp.ne.s32.totalorder %s49, %s50
      %p59 = scmp.eq.s32.totalorder %s32, 0
      %p60 = por %p58, %p59
      %p61 = scmp.ne.s32.totalorder %s49, %s50
      %p62 = scmp.eq.s32.totalorder %s33, 3
      %p63 = por %p61, %p62
      %p65 = scmp.ne.s32.totalorder %s50, %s64
      %p66 = scmp.eq.s32.totalorder %s33, 0
      %p67 = por %p65, %p66
      %s69 = sadd.s32 %s68, 1
      %p72 = scmp.eq.s32.totalorder %s27, 3
      %p73 = scmp.ne.s32.totalorder %s68, %s70
      %p74 = scmp.eq.s32.totalorder %s27, 0
      %p75 = por %p73, %p74
      %p76 = scmp.ne.s32.totalorder %s68, %s70
      %p77 = scmp.eq.s32.totalorder %s32, 3
      %p78 = por %p76, %p77
      %p79 = scmp.ne.s32.totalorder %s70, %s71
      %p80 = scmp.eq.s32.totalorder %s32, 0
      %p81 = por %p79, %p80
      %p82 = scmp.ne.s32.totalorder %s70, %s71
      %p83 = scmp.eq.s32.totalorder %s33, 3
      %p84 = por %p82, %p83
      %p86 = scmp.ne.s32.totalorder %s71, %s85
      %p87 = scmp.eq.s32.totalorder %s33, 0
      %p88 = por %p86, %p87
      %s90 = sadd.s32 %s89, 1
      %p93 = scmp.eq.s32.totalorder %s27, 3
      %p94 = scmp.ne.s32.totalorder %s89, %s91
      %p95 = scmp.eq.s32.totalorder %s27, 0
      %p96 = por %p94, %p95
      %p97 = scmp.ne.s32.totalorder %s89, %s91
      %p98 = scmp.eq.s32.totalorder %s32, 3
      %p99 = por %p97, %p98
      %p100 = scmp.ne.s32.totalorder %s91, %s92
      %p101 = scmp.eq.s32.totalorder %s32, 0
      %p102 = por %p100, %p101
      %p103 = scmp.ne.s32.totalorder %s91, %s92
      %p104 = scmp.eq.s32.totalorder %s33, 3
      %p105 = por %p103, %p104
      %p107 = scmp.ne.s32.totalorder %s92, %s106
      %p108 = scmp.eq.s32.totalorder %s33, 0
      %p109 = por %p107, %p108
      %s111 = sadd.s32 %s110, 1
      %p114 = scmp.eq.s32.totalorder %s27, 3
      %p115 = scmp.ne.s32.totalorder %s110, %s112
      %p116 = scmp.eq.s32.totalorder %s27, 0
      %p117 = por %p115, %p116
      %p118 = scmp.ne.s32.totalorder %s110, %s112
      %p119 = scmp.eq.s32.totalorder %s32, 3
      %p120 = por %p118, %p119
      %p121 = scmp.ne.s32.totalorder %s112, %s113
      %p122 = scmp.eq.s32.totalorder %s32, 0
      %p123 = por %p121, %p122
      %p124 = scmp.ne.s32.totalorder %s112, %s113
      %p125 = scmp.eq.s32.totalorder %s33, 3
      %p126 = por %p124, %p125
      %p128 = scmp.ne.s32.totalorder %s113, %s127
      %p129 = scmp.eq.s32.totalorder %s33, 0
      %p130 = por %p128, %p129
      %s132 = sadd.s32 %s131, 1
      %p135 = scmp.eq.s32.totalorder %s27, 3
      %p136 = scmp.ne.s32.totalorder %s131, %s133
      %p137 = scmp.eq.s32.totalorder %s27, 0
      %p138 = por %p136, %p137
      %p139 = scmp.ne.s32.totalorder %s131, %s133
      %p140 = scmp.eq.s32.totalorder %s32, 3
      %p141 = por %p139, %p140
      %p142 = scmp.ne.s32.totalorder %s133, %s134
      %p143 = scmp.eq.s32.totalorder %s32, 0
      %p144 = por %p142, %p143
      %p145 = scmp.ne.s32.totalorder %s133, %s134
      %p146 = scmp.eq.s32.totalorder %s33, 3
      %p147 = por %p145, %p146
      %p149 = scmp.ne.s32.totalorder %s134, %s148
      %p150 = scmp.eq.s32.totalorder %s33, 0
      %p151 = por %p149, %p150
      %s153 = sadd.s32 %s152, 1
      %p156 = scmp.eq.s32.totalorder %s27, 3
      %p157 = scmp.ne.s32.totalorder %s152, %s154
      %p158 = scmp.eq.s32.totalorder %s27, 0
      %p159 = por %p157, %p158
      %p160 = scmp.ne.s32.totalorder %s152, %s154
      %p161 = scmp.eq.s32.totalorder %s32, 3
      %p162 = por %p160, %p161
      %p163 = scmp.ne.s32.totalorder %s154, %s155
      %p164 = scmp.eq.s32.totalorder %s32, 0
      %p165 = por %p163, %p164
      %p166 = scmp.ne.s32.totalorder %s154, %s155
      %p167 = scmp.eq.s32.totalorder %s33, 3
      %p168 = por %p166, %p167
      %p170 = scmp.ne.s32.totalorder %s155, %s169
      %p171 = scmp.eq.s32.totalorder %s33, 0
      %p172 = por %p170, %p171
      %s173 = smul.u32 %s34, 2
      %s174 = sadd.s32 %s173, %s35
      %s175 = smul.u32 %s46, 2
      %s176 = sadd.s32 %s175, %s42
      %s177 = ssub.s32 %s174, %s176
      %p178 = scmp.eq.s32.totalorder %s177, 0
      %s180 = sadd.s32 %s179, 1
      %s181 = scalar_select %p178, %s179, %s180
      %p184 = pneg %p178
      %p185 = scmp.eq.s32.totalorder %s27, 3
      %p186 = por %p184, %p185
      %p187 = scmp.ne.s32.totalorder %s179, %s182
      %p188 = scmp.eq.s32.totalorder %s27, 0
      %p189 = por %p187, %p188
      %p190 = scmp.ne.s32.totalorder %s179, %s182
      %p191 = scmp.eq.s32.totalorder %s32, 3
      %p192 = por %p190, %p191
      %p193 = scmp.ne.s32.totalorder %s182, %s183
      %p194 = scmp.eq.s32.totalorder %s32, 0
      %p195 = por %p193, %p194
      %p196 = scmp.ne.s32.totalorder %s182, %s183
      %p197 = scmp.eq.s32.totalorder %s33, 3
      %p198 = por %p196, %p197
      %p200 = scmp.ne.s32.totalorder %s183, %s199
      %p201 = scmp.eq.s32.totalorder %s33, 0
      %p202 = por %p200, %p201
      %s203 = smul.u32 %s34, 2
      %s204 = sadd.s32 %s203, %s35
      %s205 = smul.u32 %s46, 2
      %s206 = sadd.s32 %s205, %s42
      %s207 = ssub.s32 %s204, %s206
      %p208 = scmp.eq.s32.totalorder %s207, 0
      %s210 = sadd.s32 %s209, 1
      %s211 = scalar_select %p208, %s209, %s210
      %p214 = pneg %p208
      %p215 = scmp.eq.s32.totalorder %s27, 3
      %p216 = por %p214, %p215
      %p217 = scmp.ne.s32.totalorder %s209, %s212
      %p218 = scmp.eq.s32.totalorder %s27, 0
      %p219 = por %p217, %p218
      %p220 = scmp.ne.s32.totalorder %s209, %s212
      %p221 = scmp.eq.s32.totalorder %s32, 3
      %p222 = por %p220, %p221
      %p223 = scmp.ne.s32.totalorder %s212, %s213
      %p224 = scmp.eq.s32.totalorder %s32, 0
      %p225 = por %p223, %p224
      %p226 = scmp.ne.s32.totalorder %s212, %s213
      %p227 = scmp.eq.s32.totalorder %s33, 3
      %p228 = por %p226, %p227
      %p230 = scmp.ne.s32.totalorder %s213, %s229
      %p231 = scmp.eq.s32.totalorder %s33, 0
      %p232 = por %p230, %p231
      %s233 = smul.u32 %s34, 2
      %s234 = sadd.s32 %s233, %s35
      %s235 = smul.u32 %s46, 2
      %s236 = sadd.s32 %s235, %s42
      %s237 = ssub.s32 %s234, %s236
      %p238 = scmp.eq.s32.totalorder %s237, 0
      %s240 = sadd.s32 %s239, 1
      %s241 = scalar_select %p238, %s239, %s240
      %p244 = pneg %p238
      %p245 = scmp.eq.s32.totalorder %s27, 3
      %p246 = por %p244, %p245
      %p247 = scmp.ne.s32.totalorder %s239, %s242
      %p248 = scmp.eq.s32.totalorder %s27, 0
      %p249 = por %p247, %p248
      %p250 = scmp.ne.s32.totalorder %s239, %s242
      %p251 = scmp.eq.s32.totalorder %s32, 3
      %p252 = por %p250, %p251
      %p253 = scmp.ne.s32.totalorder %s242, %s243
      %p254 = scmp.eq.s32.totalorder %s32, 0
      %p255 = por %p253, %p254
      %p256 = scmp.ne.s32.totalorder %s242, %s243
      %p257 = scmp.eq.s32.totalorder %s33, 3
      %p258 = por %p256, %p257
      %p260 = scmp.ne.s32.totalorder %s243, %s259
      %p261 = scmp.eq.s32.totalorder %s33, 0
      %p262 = por %p260, %p261
      %s263 = ssub.s32 %s34, %s46
      %p264 = scmp.eq.s32.totalorder %s263, 0
      %s266 = sadd.s32 %s265, 1
      %s267 = scalar_select %p264, %s265, %s266
      %p270 = pneg %p264
      %p271 = scmp.eq.s32.totalorder %s27, 3
      %p272 = por %p270, %p271
      %p273 = scmp.ne.s32.totalorder %s265, %s268
      %p274 = scmp.eq.s32.totalorder %s27, 0
      %p275 = por %p273, %p274
      %p276 = scmp.ne.s32.totalorder %s265, %s268
      %p277 = scmp.eq.s32.totalorder %s32, 3
      %p278 = por %p276, %p277
      %p279 = scmp.ne.s32.totalorder %s268, %s269
      %p280 = scmp.eq.s32.totalorder %s32, 0
      %p281 = por %p279, %p280
      %p282 = scmp.ne.s32.totalorder %s268, %s269
      %p283 = scmp.eq.s32.totalorder %s33, 3
      %p284 = por %p282, %p283
      %p286 = scmp.ne.s32.totalorder %s269, %s285
      %p287 = scmp.eq.s32.totalorder %s33, 0
      %p288 = por %p286, %p287
      %p289 = scmp.le.s32.totalorder 1, %s27
      %p290 = scmp.lt.s32.totalorder %s27, 5
      %p291 = pnand %p289, %p290
      %p292 = pneg %p291
      // Predicated region
      $region9: #{decoder_rnn_forward.1} parent=5 // pred_check
        _
      $region10: #{decoder_rnn_forward.1} parent=5 // pred_check_branch
        %294 = sbr.rel (%p291) target = $region12
      $region11: #{decoder_rnn_forward.1} parent=5 // pred_region
        %s295 = ssub.s32 %s27, 1
        // Predicated region
        $region13: #{decoder_rnn_forward.1} parent=11 // pred_check
          %p296 = pneg %p60
        $region14: #{decoder_rnn_forward.1} parent=11 // pred_check_branch
          %298 = sbr.rel (%p296) target = $region16
        $region15: #{decoder_rnn_forward.1} parent=11 // pred_region
          %s300 = ssub.s32 16, 16
          %301 = vsyncadd [#allocation8], %s300
          %304 = dma.hbm_to_smem %s0, 16, [#allocation5], [#allocation8]
        $region16: #{decoder_rnn_forward.1} parent=11 // pred_fallthru
          _
        // Predicated region
        $region17: #{decoder_rnn_forward.1} parent=11 // pred_check
          %p305 = pneg %p81
        $region18: #{decoder_rnn_forward.1} parent=11 // pred_check_branch
          %307 = sbr.rel (%p305) target = $region20
        $region19: #{decoder_rnn_forward.1} parent=11 // pred_region
          %s309 = ssub.s32 128, 128
          %310 = vsyncadd [#allocation6], %s309
          %s312 = sshll.u32 [#allocation9], 4
          %s313 = int_to_ptr.vmem [resolvable:$true] %s312
          %315 = dma.hbm_to_vmem [thread:$0]  %s2, 128, %s313, [#allocation6]
        $region20: #{decoder_rnn_forward.1} parent=11 // pred_fallthru
          _
        // Predicated region
        $region21: #{decoder_rnn_forward.1} parent=11 // pred_check
          %p316 = pneg %p102
        $region22: #{decoder_rnn_forward.1} parent=11 // pred_check_branch
          %318 = sbr.rel (%p316) target = $region24
        $region23: #{decoder_rnn_forward.1} parent=11 // pred_region
          %s320 = ssub.s32 3072, 3072
          %321 = vsyncadd [#allocation11], %s320
          %s322 = sshll.u32 [#allocation10], 4
          %s323 = int_to_ptr.vmem [resolvable:$true] %s322
          %328 = dma.hbm_to_vmem [thread:$0]  %s3, 3072, %s323, [#allocation11], 192, 192, 12
        $region24: #{decoder_rnn_forward.1} parent=11 // pred_fallthru
          _
        // Predicated region
        $region25: #{decoder_rnn_forward.1} parent=11 // pred_check
          %p329 = pneg %p123
        $region26: #{decoder_rnn_forward.1} parent=11 // pred_check_branch
          %331 = sbr.rel (%p329) target = $region28
        $region27: #{decoder_rnn_forward.1} parent=11 // pred_region
          %s333 = ssub.s32 3072, 3072
          %334 = vsyncadd [#allocation11], %s333
          %s335 = sshll.u32 [#allocation12], 4
          %s336 = int_to_ptr.vmem [resolvable:$true] %s335
          %341 = dma.hbm_to_vmem [thread:$0]  %s4, 3072, %s336, [#allocation11], 192, 192, 12
        $region28: #{decoder_rnn_forward.1} parent=11 // pred_fallthru
          _
        // Predicated region
        $region29: #{decoder_rnn_forward.1} parent=11 // pred_check
          %p342 = pneg %p144
        $region30: #{decoder_rnn_forward.1} parent=11 // pred_check_branch
          %344 = sbr.rel (%p342) target = $region32
        $region31: #{decoder_rnn_forward.1} parent=11 // pred_region
          %s346 = ssub.s32 48, 48
          %347 = vsyncadd [#allocation14], %s346
          %s349 = sshll.u32 [#allocation13], 4
          %s350 = int_to_ptr.vmem [resolvable:$true] %s349
          %352 = dma.hbm_to_vmem [thread:$0]  %s5, 48, %s350, [#allocation14]
        $region32: #{decoder_rnn_forward.1} parent=11 // pred_fallthru
          _
        // Predicated region
        $region33: #{decoder_rnn_forward.1} parent=11 // pred_check
          %p353 = pneg %p165
        $region34: #{decoder_rnn_forward.1} parent=11 // pred_check_branch
          %355 = sbr.rel (%p353) target = $region36
        $region35: #{decoder_rnn_forward.1} parent=11 // pred_region
          %s357 = ssub.s32 48, 48
          %358 = vsyncadd [#allocation14], %s357
          %s360 = sshll.u32 [#allocation15], 4
          %s361 = int_to_ptr.vmem [resolvable:$true] %s360
          %363 = dma.hbm_to_vmem [thread:$0]  %s6, 48, %s361, [#allocation14]
        $region36: #{decoder_rnn_forward.1} parent=11 // pred_fallthru
          _
      $region12: #{decoder_rnn_forward.1} parent=5 // pred_fallthru
        _
      %p364 = scmp.lt.s32.totalorder %s27, 4
      // Predicated region
      $region37: #{decoder_rnn_forward.1} parent=5 // pred_check
        %p365 = pneg %p364
      $region38: #{decoder_rnn_forward.1} parent=5 // pred_check_branch
        %367 = sbr.rel (%p365) target = $region40
      $region39: #{decoder_rnn_forward.1} parent=5 // pred_region
        // Predicated region
        $region41: #{decoder_rnn_forward.1} parent=39 // pred_check
          %p368 = pneg %p189
        $region42: #{decoder_rnn_forward.1} parent=39 // pred_check_branch
          %370 = sbr.rel (%p368) target = $region44
        $region43: #{decoder_rnn_forward.1} parent=39 // pred_region
          %s371 = sand.u32 %s27, 1
          %s372 = scalar_lea.sflag [#allocation17], %s371
          %s373 = sand.u32 %s179, 1
          %s374 = smul.addr %s373, 1024
          %s375 = scalar_lea.vmem [#allocation16], %s374
          %s376 = smul.u32 %s34, 2
          %s377 = sadd.s32 %s376, %s35
          %s378 = smul.u32 16, %s377
          %s380 = ssub.s32 16384, 16384
          %381 = vsyncadd %s372, %s380
          %s382 = smul.addr %s378, 64
          %s383 = scalar_lea.hbm %s7, %s382
          %s384 = sshll.u32 %s375, 4
          %s385 = int_to_ptr.vmem [resolvable:$true] %s384
          %390 = dma.hbm_to_vmem [thread:$0]  %s383, 16384, %s385, %s372, 4096, 1024, 64
        $region44: #{decoder_rnn_forward.1} parent=39 // pred_fallthru
          _
        // Predicated region
        $region45: #{decoder_rnn_forward.1} parent=39 // pred_check
          %p391 = pneg %p219
        $region46: #{decoder_rnn_forward.1} parent=39 // pred_check_branch
          %393 = sbr.rel (%p391) target = $region48
        $region47: #{decoder_rnn_forward.1} parent=39 // pred_region
          %s394 = sand.u32 %s27, 1
          %s395 = scalar_lea.sflag [#allocation17], %s394
          %s396 = sand.u32 %s209, 1
          %s397 = smul.addr %s396, 16
          %s398 = scalar_lea.vmem [#allocation18], %s397
          %s399 = smul.u32 %s34, 2
          %s400 = sadd.s32 %s399, %s35
          %s401 = smul.u32 16, %s400
          %s403 = ssub.s32 256, 256
          %404 = vsyncadd %s395, %s403
          %s405 = smul.addr %s401, 16
          %s406 = scalar_lea.hbm %s8, %s405
          %s408 = sshll.u32 %s398, 4
          %s409 = int_to_ptr.vmem [resolvable:$true] %s408
          %411 = dma.hbm_to_vmem [thread:$0]  %s406, 256, %s409, %s395
        $region48: #{decoder_rnn_forward.1} parent=39 // pred_fallthru
          _
      $region40: #{decoder_rnn_forward.1} parent=5 // pred_fallthru
        _
      %p412 = scmp.le.s32.totalorder 1, %s27
      %p413 = scmp.lt.s32.totalorder %s27, 5
      %p414 = pnand %p412, %p413
      %p415 = pneg %p414
      // Predicated region
      $region49: #{decoder_rnn_forward.1} parent=5 // pred_check
        _
      $region50: #{decoder_rnn_forward.1} parent=5 // pred_check_branch
        %417 = sbr.rel (%p414) target = $region52
      $region51: #{decoder_rnn_forward.1} parent=5 // pred_region
        %s418 = ssub.s32 %s27, 1
        // Predicated region
        $region53: #{decoder_rnn_forward.1} parent=51 // pred_check
          %p419 = pneg %p60
        $region54: #{decoder_rnn_forward.1} parent=51 // pred_check_branch
          %421 = sbr.rel (%p419) target = $region56
        $region55: #{decoder_rnn_forward.1} parent=51 // pred_region
          %422 = dma.done [#allocation8], 16
        $region56: #{decoder_rnn_forward.1} parent=51 // pred_fallthru
          _
        // Predicated region
        $region57: #{decoder_rnn_forward.1} parent=51 // pred_check
          %p423 = pneg %p81
        $region58: #{decoder_rnn_forward.1} parent=51 // pred_check_branch
          %425 = sbr.rel (%p423) target = $region60
        $region59: #{decoder_rnn_forward.1} parent=51 // pred_region
          %426 = dma.done [#allocation6], 128
        $region60: #{decoder_rnn_forward.1} parent=51 // pred_fallthru
          _
        // Predicated region
        $region61: #{decoder_rnn_forward.1} parent=51 // pred_check
          %p427 = pneg %p102
        $region62: #{decoder_rnn_forward.1} parent=51 // pred_check_branch
          %429 = sbr.rel (%p427) target = $region64
        $region63: #{decoder_rnn_forward.1} parent=51 // pred_region
          %430 = dma.done [#allocation11], 3072
        $region64: #{decoder_rnn_forward.1} parent=51 // pred_fallthru
          _
        // Predicated region
        $region65: #{decoder_rnn_forward.1} parent=51 // pred_check
          %p431 = pneg %p123
        $region66: #{decoder_rnn_forward.1} parent=51 // pred_check_branch
          %433 = sbr.rel (%p431) target = $region68
        $region67: #{decoder_rnn_forward.1} parent=51 // pred_region
          %434 = dma.done [#allocation11], 3072
        $region68: #{decoder_rnn_forward.1} parent=51 // pred_fallthru
          _
        // Predicated region
        $region69: #{decoder_rnn_forward.1} parent=51 // pred_check
          %p435 = pneg %p144
        $region70: #{decoder_rnn_forward.1} parent=51 // pred_check_branch
          %437 = sbr.rel (%p435) target = $region72
        $region71: #{decoder_rnn_forward.1} parent=51 // pred_region
          %438 = dma.done [#allocation14], 48
        $region72: #{decoder_rnn_forward.1} parent=51 // pred_fallthru
          _
        // Predicated region
        $region73: #{decoder_rnn_forward.1} parent=51 // pred_check
          %p439 = pneg %p165
        $region74: #{decoder_rnn_forward.1} parent=51 // pred_check_branch
          %441 = sbr.rel (%p439) target = $region76
        $region75: #{decoder_rnn_forward.1} parent=51 // pred_region
          %442 = dma.done [#allocation14], 48
        $region76: #{decoder_rnn_forward.1} parent=51 // pred_fallthru
          _
        %s443 = sand.u32 %s32, 1
        %s444 = scalar_lea.sflag [#allocation17], %s443
        %s445 = sand.u32 %s182, 1
        %s446 = smul.addr %s445, 1024
        %s447 = scalar_lea.vmem [#allocation16], %s446
        // Predicated region
        $region77: #{decoder_rnn_forward.1} parent=51 // pred_check
          %p448 = pneg %p195
        $region78: #{decoder_rnn_forward.1} parent=51 // pred_check_branch
          %450 = sbr.rel (%p448) target = $region80
        $region79: #{decoder_rnn_forward.1} parent=51 // pred_region
          %451 = dma.done %s444, 16384
        $region80: #{decoder_rnn_forward.1} parent=51 // pred_fallthru
          _
        %s452 = sand.u32 %s32, 1
        %s453 = scalar_lea.sflag [#allocation17], %s452
        %s454 = sand.u32 %s212, 1
        %s455 = smul.addr %s454, 16
        %s456 = scalar_lea.vmem [#allocation18], %s455
        // Predicated region
        $region81: #{decoder_rnn_forward.1} parent=51 // pred_check
          %p457 = pneg %p225
        $region82: #{decoder_rnn_forward.1} parent=51 // pred_check_branch
          %459 = sbr.rel (%p457) target = $region84
        $region83: #{decoder_rnn_forward.1} parent=51 // pred_region
          %460 = dma.done %s453, 256
        $region84: #{decoder_rnn_forward.1} parent=51 // pred_fallthru
          _
        %461 = sfence
        %p462 = pneg %p60
        %p463 = pneg %p57
        %p464 = pneg %p81
        %p465 = pneg %p78
        %p466 = pneg %p102
        %p467 = pneg %p99
        %p468 = pneg %p123
        %p469 = pneg %p120
        %p470 = pneg %p144
        %p471 = pneg %p141
        %p472 = pneg %p165
        %p473 = pneg %p162
        %s474 = sand.u32 %s32, 1
        %s475 = scalar_lea.sflag [#allocation17], %s474
        %s476 = sand.u32 %s182, 1
        %s477 = smul.addr %s476, 1024
        %s478 = scalar_lea.vmem [#allocation16], %s477
        %p479 = pneg %p195
        %p480 = pneg %p192
        %s481 = sand.u32 %s32, 1
        %s482 = scalar_lea.sflag [#allocation17], %s481
        %s483 = sand.u32 %s212, 1
        %s484 = smul.addr %s483, 16
        %s485 = scalar_lea.vmem [#allocation18], %s484
        %p486 = pneg %p225
        %p487 = pneg %p222
        %p488 = pneg %p255
        %p489 = pneg %p252
        %s490 = sand.u32 %s242, 1
        %s491 = scalar_lea.sflag [#allocation7], %s490
        %s492 = sand.u32 %s242, 1
        %s493 = smul.addr %s492, 128
        %s494 = scalar_lea.vmem [#allocation19], %s493
        %p495 = pneg %p281
        %p496 = pneg %p278
        %p497 = scmp.lt.s32.totalorder %s36, 1
        %s498 = scalar_select %p497, %s36, 1
        %s499 = smul.addr %s498, 8
        %s500 = scalar_lea.vmem %s10, %s499
        %s501 = smul.u32 %s36, 2
        %s502 = sadd.s32 %s501, %s37
        %s503 = smul.u32 16, %s502
        %s504 = smul.u32 %s36, 2
        %s505 = sadd.s32 %s504, %s37
        %s506 = smul.u32 16, %s505
        %s507 = smul.u32 %s36, 2
        %s508 = sadd.s32 %s507, %s37
        %s509 = smul.u32 16, %s508
        %p510 = scmp.lt.s32.totalorder %s36, 1
        %s511 = scalar_select %p510, %s36, 1
        %s512 = smul.addr %s511, 8
        %s513 = scalar_lea.vmem %s10, %s512
        %p515 = scmp.eq.s32.totalorder %s37, 0
        // Predicated region
        $region85: #{decoder_rnn_forward.1} parent=51 // pred_check
          %p516 = pneg %p515
        $region86: #{decoder_rnn_forward.1} parent=51 // pred_check_branch
          %518 = sbr.rel (%p516) target = $region88
        $region87: #{decoder_rnn_forward.1} parent=51 // pred_region
          %s519 = sld [smem:[#allocation5]]
          %s520 = smul.addr %s519, 16
          %s521 = scalar_lea.hbm %s1, %s520
          // Predicated region
          $region89: #{decoder_rnn_forward.1} parent=87 // pred_check
            _
          $region90: #{decoder_rnn_forward.1} parent=87 // pred_check_branch
            %523 = sbr.rel target = $region92
          $region91: #{decoder_rnn_forward.1} parent=87 // pred_region
            %524 = sst [smem:[#allocation22]] [#allocation21]
            %525 = sst [smem:[#allocation23]] [#allocation20]
          $region92: #{decoder_rnn_forward.1} parent=87 // pred_fallthru
            _
          %527 = shalt.err (0)
          %s529 = sshll.u32 [#allocation2], 4
          %s530 = int_to_ptr.vmem [resolvable:$true] %s529
          %532 = dma.hbm_to_vmem [thread:$0]  %s521, 16, %s530, [#allocation4]
          %s533 = sld [smem:[#allocation5 + $0x1]]
          %s534 = smul.addr %s533, 16
          %s535 = scalar_lea.hbm %s1, %s534
          %s536 = scalar_lea.vmem [#allocation2], 1
          %s537 = scalar_lea.sflag [#allocation4], 1
          // Predicated region
          $region93: #{decoder_rnn_forward.1} parent=87 // pred_check
            _
          $region94: #{decoder_rnn_forward.1} parent=87 // pred_check_branch
            %539 = sbr.rel target = $region96
          $region95: #{decoder_rnn_forward.1} parent=87 // pred_region
            %540 = sst [smem:[#allocation22]] [#allocation25]
            %541 = sst [smem:[#allocation23]] [#allocation24]
          $region96: #{decoder_rnn_forward.1} parent=87 // pred_fallthru
            _
          %543 = shalt.err (0)
          %s545 = sshll.u32 %s536, 4
          %s546 = int_to_ptr.vmem [resolvable:$true] %s545
          %548 = dma.hbm_to_vmem [thread:$0]  %s535, 16, %s546, %s537
          %s549 = sld [smem:[#allocation5 + $0x2]]
          %s550 = smul.addr %s549, 16
          %s551 = scalar_lea.hbm %s1, %s550
          %s552 = scalar_lea.vmem [#allocation2], 2
          %s553 = scalar_lea.sflag [#allocation4], 2
          // Predicated region
          $region97: #{decoder_rnn_forward.1} parent=87 // pred_check
            _
          $region98: #{decoder_rnn_forward.1} parent=87 // pred_check_branch
            %555 = sbr.rel target = $region100
          $region99: #{decoder_rnn_forward.1} parent=87 // pred_region
            %556 = sst [smem:[#allocation22]] [#allocation27]
            %557 = sst [smem:[#allocation23]] [#allocation26]
          $region100: #{decoder_rnn_forward.1} parent=87 // pred_fallthru
            _
          %559 = shalt.err (0)
          %s561 = sshll.u32 %s552, 4
          %s562 = int_to_ptr.vmem [resolvable:$true] %s561
          %564 = dma.hbm_to_vmem [thread:$0]  %s551, 16, %s562, %s553
          %s565 = sld [smem:[#allocation5 + $0x3]]
          %s566 = smul.addr %s565, 16
          %s567 = scalar_lea.hbm %s1, %s566
          %s568 = scalar_lea.vmem [#allocation2], 3
          %s569 = scalar_lea.sflag [#allocation4], 3
          // Predicated region
          $region101: #{decoder_rnn_forward.1} parent=87 // pred_check
            _
          $region102: #{decoder_rnn_forward.1} parent=87 // pred_check_branch
            %571 = sbr.rel target = $region104
          $region103: #{decoder_rnn_forward.1} parent=87 // pred_region
            %572 = sst [smem:[#allocation22]] [#allocation29]
            %573 = sst [smem:[#allocation23]] [#allocation28]
          $region104: #{decoder_rnn_forward.1} parent=87 // pred_fallthru
            _
          %575 = shalt.err (0)
          %s577 = sshll.u32 %s568, 4
          %s578 = int_to_ptr.vmem [resolvable:$true] %s577
          %580 = dma.hbm_to_vmem [thread:$0]  %s567, 16, %s578, %s569
          %s581 = sld [smem:[#allocation5 + $0x4]]
          %s582 = smul.addr %s581, 16
          %s583 = scalar_lea.hbm %s1, %s582
          %s584 = scalar_lea.vmem [#allocation2], 4
          %s585 = scalar_lea.sflag [#allocation4], 4
          // Predicated region
          $region105: #{decoder_rnn_forward.1} parent=87 // pred_check
            _
          $region106: #{decoder_rnn_forward.1} parent=87 // pred_check_branch
            %587 = sbr.rel target = $region108
          $region107: #{decoder_rnn_forward.1} parent=87 // pred_region
            %588 = sst [smem:[#allocation22]] [#allocation31]
            %589 = sst [smem:[#allocation23]] [#allocation30]
          $region108: #{decoder_rnn_forward.1} parent=87 // pred_fallthru
            _
          %591 = shalt.err (0)
          %s593 = sshll.u32 %s584, 4
          %s594 = int_to_ptr.vmem [resolvable:$true] %s593
          %596 = dma.hbm_to_vmem [thread:$0]  %s583, 16, %s594, %s585
          %s597 = sld [smem:[#allocation5 + $0x5]]
          %s598 = smul.addr %s597, 16
          %s599 = scalar_lea.hbm %s1, %s598
          %s600 = scalar_lea.vmem [#allocation2], 5
          %s601 = scalar_lea.sflag [#allocation4], 5
          // Predicated region
          $region109: #{decoder_rnn_forward.1} parent=87 // pred_check
            _
          $region110: #{decoder_rnn_forward.1} parent=87 // pred_check_branch
            %603 = sbr.rel target = $region112
          $region111: #{decoder_rnn_forward.1} parent=87 // pred_region
            %604 = sst [smem:[#allocation22]] [#allocation33]
            %605 = sst [smem:[#allocation23]] [#allocation32]
          $region112: #{decoder_rnn_forward.1} parent=87 // pred_fallthru
            _
          %607 = shalt.err (0)
          %s609 = sshll.u32 %s600, 4
          %s610 = int_to_ptr.vmem [resolvable:$true] %s609
          %612 = dma.hbm_to_vmem [thread:$0]  %s599, 16, %s610, %s601
          %s613 = sld [smem:[#allocation5 + $0x6]]
          %s614 = smul.addr %s613, 16
          %s615 = scalar_lea.hbm %s1, %s614
          %s616 = scalar_lea.vmem [#allocation2], 6
          %s617 = scalar_lea.sflag [#allocation4], 6
          // Predicated region
          $region113: #{decoder_rnn_forward.1} parent=87 // pred_check
            _
          $region114: #{decoder_rnn_forward.1} parent=87 // pred_check_branch
            %619 = sbr.rel target = $region116
          $region115: #{decoder_rnn_forward.1} parent=87 // pred_region
            %620 = sst [smem:[#allocation22]] [#allocation35]
            %621 = sst [smem:[#allocation23]] [#allocation34]
          $region116: #{decoder_rnn_forward.1} parent=87 // pred_fallthru
            _
          %623 = shalt.err (0)
          %s625 = sshll.u32 %s616, 4
          %s626 = int_to_ptr.vmem [resolvable:$true] %s625
          %628 = dma.hbm_to_vmem [thread:$0]  %s615, 16, %s626, %s617
          %s629 = sld [smem:[#allocation5 + $0x7]]
          %s630 = smul.addr %s629, 16
          %s631 = scalar_lea.hbm %s1, %s630
          %s632 = scalar_lea.vmem [#allocation2], 7
          %s633 = scalar_lea.sflag [#allocation4], 7
          // Predicated region
          $region117: #{decoder_rnn_forward.1} parent=87 // pred_check
            _
          $region118: #{decoder_rnn_forward.1} parent=87 // pred_check_branch
            %635 = sbr.rel target = $region120
          $region119: #{decoder_rnn_forward.1} parent=87 // pred_region
            %636 = sst [smem:[#allocation22]] [#allocation37]
            %637 = sst [smem:[#allocation23]] [#allocation36]
          $region120: #{decoder_rnn_forward.1} parent=87 // pred_fallthru
            _
          %639 = shalt.err (0)
          %s641 = sshll.u32 %s632, 4
          %s642 = int_to_ptr.vmem [resolvable:$true] %s641
          %644 = dma.hbm_to_vmem [thread:$0]  %s631, 16, %s642, %s633
          %v645 = vld [vmem:[#allocation9] sm:$0xff]
          %v646 = vpack.c.bf16 %v645, %v645
          %v647 = vld [vmem:[#allocation12] sm:$0xff]
          %v648 = vld [vmem:[#allocation12 + $0x8] sm:$0xf]
          %v649 = vld [vmem:[#allocation12 + $0xc] sm:$0xff]
          %v650 = vld [vmem:[#allocation12 + $0x14] sm:$0xf]
          %v651 = vld [vmem:[#allocation12 + $0x18] sm:$0xff]
          %v652 = vld [vmem:[#allocation12 + $0x20] sm:$0xf]
          %v653 = vld [vmem:[#allocation12 + $0x24] sm:$0xff]
          %v654 = vld [vmem:[#allocation12 + $0x2c] sm:$0xf]
          %v655 = vld [vmem:[#allocation12 + $0x30] sm:$0xff]
          %v656 = vld [vmem:[#allocation12 + $0x38] sm:$0xf]
          %v657 = vld [vmem:[#allocation12 + $0x3c] sm:$0xff]
          %v658 = vld [vmem:[#allocation12 + $0x44] sm:$0xf]
          %v659 = vld [vmem:[#allocation12 + $0x48] sm:$0xff]
          %v660 = vld [vmem:[#allocation12 + $0x50] sm:$0xf]
          %v661 = vld [vmem:[#allocation12 + $0x54] sm:$0xff]
          %v662 = vld [vmem:[#allocation12 + $0x5c] sm:$0xf]
          %v663 = vld [vmem:[#allocation12 + $0x60] sm:$0xff]
          %v664 = vld [vmem:[#allocation12 + $0x68] sm:$0xf]
          %v665 = vld [vmem:[#allocation12 + $0x6c] sm:$0xff]
          %v666 = vld [vmem:[#allocation12 + $0x74] sm:$0xf]
          %v667 = vld [vmem:[#allocation12 + $0x78] sm:$0xff]
          %v668 = vld [vmem:[#allocation12 + $0x80] sm:$0xf]
          %v669 = vld [vmem:[#allocation12 + $0x84] sm:$0xff]
          %v670 = vld [vmem:[#allocation12 + $0x8c] sm:$0xf]
          %v671 = vld [vmem:[#allocation12 + $0x90] sm:$0xff]
          %v672 = vld [vmem:[#allocation12 + $0x98] sm:$0xf]
          %v673 = vld [vmem:[#allocation12 + $0x9c] sm:$0xff]
          %v674 = vld [vmem:[#allocation12 + $0xa4] sm:$0xf]
          %v675 = vld [vmem:[#allocation12 + $0xa8] sm:$0xff]
          %v676 = vld [vmem:[#allocation12 + $0xb0] sm:$0xf]
          %v677 = vld [vmem:[#allocation12 + $0xb4] sm:$0xff]
          %v678 = vld [vmem:[#allocation12 + $0xbc] sm:$0xf]
          %v679 = vld [vmem:[#allocation15] sm:$0x7]
          %v681 = vlaneseq
          %v682 = vshrl.u32 %v681, 7
          %v683 = vsub.s32 0, %v682
          %v684 = vrot.slane %v679, %v683
          %v685 = vlaneseq
          %v686 = vshrl.u32 %v685, 7
          %v687 = vsub.s32 1, %v686
          %v688 = vrot.slane %v679, %v687
          %v689 = vlaneseq
          %v690 = vshrl.u32 %v689, 7
          %v691 = vsub.s32 2, %v690
          %v692 = vrot.slane %v679, %v691
          %v728 = vunpack.c.l.b16 %v647
          %v729 = vunpack.c.h.b16 %v647
          %v730 = vunpack.c.l.b16 %v648
          %v731 = vunpack.c.l.b16 %v649
          %v732 = vunpack.c.h.b16 %v649
          %v733 = vunpack.c.l.b16 %v650
          %v734 = vunpack.c.l.b16 %v651
          %v735 = vunpack.c.h.b16 %v651
          %v736 = vunpack.c.l.b16 %v652
          %v737 = vunpack.c.l.b16 %v653
          %v738 = vunpack.c.h.b16 %v653
          %v739 = vunpack.c.l.b16 %v654
          %v740 = vunpack.c.l.b16 %v655
          %v741 = vunpack.c.h.b16 %v655
          %v742 = vunpack.c.l.b16 %v656
          %v743 = vunpack.c.l.b16 %v657
          %v744 = vunpack.c.h.b16 %v657
          %v745 = vunpack.c.l.b16 %v658
          %v746 = vunpack.c.l.b16 %v659
          %v747 = vunpack.c.h.b16 %v659
          %v748 = vunpack.c.l.b16 %v660
          %v749 = vunpack.c.l.b16 %v661
          %v750 = vunpack.c.h.b16 %v661
          %v751 = vunpack.c.l.b16 %v662
          %v752 = vunpack.c.l.b16 %v663
          %v753 = vunpack.c.h.b16 %v663
          %v754 = vunpack.c.l.b16 %v664
          %v755 = vunpack.c.l.b16 %v665
          %v756 = vunpack.c.h.b16 %v665
          %v757 = vunpack.c.l.b16 %v666
          %v758 = vunpack.c.l.b16 %v667
          %v759 = vunpack.c.h.b16 %v667
          %v760 = vunpack.c.l.b16 %v668
          %v761 = vunpack.c.l.b16 %v669
          %v762 = vunpack.c.h.b16 %v669
          %v763 = vunpack.c.l.b16 %v670
          %v764 = vunpack.c.l.b16 %v671
          %v765 = vunpack.c.h.b16 %v671
          %v766 = vunpack.c.l.b16 %v672
          %v767 = vunpack.c.l.b16 %v673
          %v768 = vunpack.c.h.b16 %v673
          %v769 = vunpack.c.l.b16 %v674
          %v770 = vunpack.c.l.b16 %v675
          %v771 = vunpack.c.h.b16 %v675
          %v772 = vunpack.c.l.b16 %v676
          %v773 = vunpack.c.l.b16 %v677
          %v774 = vunpack.c.h.b16 %v677
          %v775 = vunpack.c.l.b16 %v678
          %v776 = vpack.c.b16 %v731, %v728
          %v777 = vpack.c.b16 %v732, %v729
          %v778 = vpack.c.b16 %v733, %v730
          %v779 = vpack.c.b16 %v737, %v734
          %v780 = vpack.c.b16 %v738, %v735
          %v781 = vpack.c.b16 %v739, %v736
          %v782 = vpack.c.b16 %v743, %v740
          %v783 = vpack.c.b16 %v744, %v741
          %v784 = vpack.c.b16 %v745, %v742
          %v785 = vpack.c.b16 %v749, %v746
          %v786 = vpack.c.b16 %v750, %v747
          %v787 = vpack.c.b16 %v751, %v748
          %v788 = vpack.c.b16 %v755, %v752
          %v789 = vpack.c.b16 %v756, %v753
          %v790 = vpack.c.b16 %v757, %v754
          %v791 = vpack.c.b16 %v761, %v758
          %v792 = vpack.c.b16 %v762, %v759
          %v793 = vpack.c.b16 %v763, %v760
          %v794 = vpack.c.b16 %v767, %v764
          %v795 = vpack.c.b16 %v768, %v765
          %v796 = vpack.c.b16 %v769, %v766
          %v797 = vpack.c.b16 %v773, %v770
          %v798 = vpack.c.b16 %v774, %v771
          %v799 = vpack.c.b16 %v775, %v772
          %824 = vmatprep.subr.bf16.mxu0 %v777
          %825 = vmatpush1.bf16.msra.mxu0 %v776
          %826 = vmatprep.subr.bf16.mxu0 %v780
          %827 = vmatpush1.bf16.msra.mxu0 %v779
          %828 = vmatprep.subr.bf16.mxu0 %v783
          %829 = vmatpush1.bf16.msra.mxu0 %v782
          %830 = vmatprep.subr.bf16.mxu0 %v786
          %831 = vmatpush1.bf16.msra.mxu0 %v785
          %832 = vmatprep.subr.bf16.mxu0 %v789
          %833 = vmatpush1.bf16.msra.mxu0 %v788
          %834 = vmatprep.subr.bf16.mxu0 %v792
          %835 = vmatpush1.bf16.msra.mxu0 %v791
          %836 = vmatprep.subr.bf16.mxu0 %v795
          %837 = vmatpush1.bf16.msra.mxu0 %v794
          %838 = vmatprep.subr.bf16.mxu0 %v798
          %839 = vmatpush1.bf16.msra.mxu0 %v797
          %840 = vmatprep.subr.bf16.mxu0 0
          %841 = vmatpush1.bf16.msra.mxu0 0
          %842 = vmatprep.subr.bf16.mxu0 0
          %843 = vmatpush1.bf16.msra.mxu0 0
          %844 = vmatprep.subr.bf16.mxu0 0
          %845 = vmatpush1.bf16.msra.mxu0 0
          %846 = vmatprep.subr.bf16.mxu0 0
          %847 = vmatpush1.bf16.msra.mxu0 0
          %848 = vmatprep.subr.bf16.mxu0 0
          %849 = vmatpush1.bf16.msra.mxu0 0
          %850 = vmatprep.subr.bf16.mxu0 0
          %851 = vmatpush1.bf16.msra.mxu0 0
          %852 = vmatprep.subr.bf16.mxu0 0
          %853 = vmatpush1.bf16.msra.mxu0 0
          %854 = vmatprep.subr.bf16.mxu0 0
          %855 = vmatpush1.bf16.msra.mxu0 0
          %856 = vmatprep.mubr.bf16.mxu0 0
          %857 = vmatmul.mubr.bf16.gmra.mrb[0].mxu0 %v646
          %v858 = vpop.f32.mrb[0].mxu0
          %v859 = vadd.f32 %v684, %v858
          %v860 = vpop.f32.mrb[0].mxu0
          %v861 = vadd.f32 %v688, %v860
          %v862 = vpop.f32.mrb[0].mxu0
          %v863 = vpop.f32.mrb[0].mxu0
          %864 = vdwg.mxu0
          %865 = vmatprep.subr.bf16.mxu0 0
          %866 = vmatpush1.bf16.msra.mxu0 %v778
          %867 = vmatprep.subr.bf16.mxu0 0
          %868 = vmatpush1.bf16.msra.mxu0 %v781
          %869 = vmatprep.subr.bf16.mxu0 0
          %870 = vmatpush1.bf16.msra.mxu0 %v784
          %871 = vmatprep.subr.bf16.mxu0 0
          %872 = vmatpush1.bf16.msra.mxu0 %v787
          %873 = vmatprep.subr.bf16.mxu0 0
          %874 = vmatpush1.bf16.msra.mxu0 %v790
          %875 = vmatprep.subr.bf16.mxu0 0
          %876 = vmatpush1.bf16.msra.mxu0 %v793
          %877 = vmatprep.subr.bf16.mxu0 0
          %878 = vmatpush1.bf16.msra.mxu0 %v796
          %879 = vmatprep.subr.bf16.mxu0 0
          %880 = vmatpush1.bf16.msra.mxu0 %v799
          %881 = vmatprep.subr.bf16.mxu0 0
          %882 = vmatpush1.bf16.msra.mxu0 0
          %883 = vmatprep.subr.bf16.mxu0 0
          %884 = vmatpush1.bf16.msra.mxu0 0
          %885 = vmatprep.subr.bf16.mxu0 0
          %886 = vmatpush1.bf16.msra.mxu0 0
          %887 = vmatprep.subr.bf16.mxu0 0
          %888 = vmatpush1.bf16.msra.mxu0 0
          %889 = vmatprep.subr.bf16.mxu0 0
          %890 = vmatpush1.bf16.msra.mxu0 0
          %891 = vmatprep.subr.bf16.mxu0 0
          %892 = vmatpush1.bf16.msra.mxu0 0
          %893 = vmatprep.subr.bf16.mxu0 0
          %894 = vmatpush1.bf16.msra.mxu0 0
          %895 = vmatprep.subr.bf16.mxu0 0
          %896 = vmatpush1.bf16.msra.mxu0 0
          %897 = vmatprep.mubr.bf16.mxu0 0
          %898 = vmatmul.mubr.bf16.gmra.mrb[0].mxu0 %v646
          %v899 = vpop.f32.mrb[0].mxu0
          %v900 = vadd.f32 %v692, %v899
          %v901 = vpop.f32.mrb[0].mxu0
          %v902 = vpop.f32.mrb[0].mxu0
          %v903 = vpop.f32.mrb[0].mxu0
          %904 = vdwg.mxu0
          %s905 = smul.u32 1, 1
          %s906 = sshll.u32 %s905, 4
          %907 = dma.done [#allocation4], %s906
          %s908 = sshll.u32 %s905, 4
          %909 = dma.done %s537, %s908
          %s910 = sshll.u32 %s905, 4
          %911 = dma.done %s553, %s910
          %s912 = sshll.u32 %s905, 4
          %913 = dma.done %s569, %s912
          %s914 = sshll.u32 %s905, 4
          %915 = dma.done %s585, %s914
          %s916 = sshll.u32 %s905, 4
          %917 = dma.done %s601, %s916
          %s918 = sshll.u32 %s905, 4
          %919 = dma.done %s617, %s918
          %s920 = sshll.u32 %s905, 4
          %921 = dma.done %s633, %s920
          %v922 = vld [vmem:[#allocation2] sm:$0xff]
          %v923 = vpack.c.bf16 %v922, %v922
          %v924 = vld [vmem:[#allocation10] sm:$0xff]
          %v925 = vld [vmem:[#allocation10 + $0x8] sm:$0xf]
          %v926 = vld [vmem:[#allocation10 + $0xc] sm:$0xff]
          %v927 = vld [vmem:[#allocation10 + $0x14] sm:$0xf]
          %v928 = vld [vmem:[#allocation10 + $0x18] sm:$0xff]
          %v929 = vld [vmem:[#allocation10 + $0x20] sm:$0xf]
          %v930 = vld [vmem:[#allocation10 + $0x24] sm:$0xff]
          %v931 = vld [vmem:[#allocation10 + $0x2c] sm:$0xf]
          %v932 = vld [vmem:[#allocation10 + $0x30] sm:$0xff]
          %v933 = vld [vmem:[#allocation10 + $0x38] sm:$0xf]
          %v934 = vld [vmem:[#allocation10 + $0x3c] sm:$0xff]
          %v935 = vld [vmem:[#allocation10 + $0x44] sm:$0xf]
          %v936 = vld [vmem:[#allocation10 + $0x48] sm:$0xff]
          %v937 = vld [vmem:[#allocation10 + $0x50] sm:$0xf]
          %v938 = vld [vmem:[#allocation10 + $0x54] sm:$0xff]
          %v939 = vld [vmem:[#allocation10 + $0x5c] sm:$0xf]
          %v940 = vld [vmem:[#allocation10 + $0x60] sm:$0xff]
          %v941 = vld [vmem:[#allocation10 + $0x68] sm:$0xf]
          %v942 = vld [vmem:[#allocation10 + $0x6c] sm:$0xff]
          %v943 = vld [vmem:[#allocation10 + $0x74] sm:$0xf]
          %v944 = vld [vmem:[#allocation10 + $0x78] sm:$0xff]
          %v945 = vld [vmem:[#allocation10 + $0x80] sm:$0xf]
          %v946 = vld [vmem:[#allocation10 + $0x84] sm:$0xff]
          %v947 = vld [vmem:[#allocation10 + $0x8c] sm:$0xf]
          %v948 = vld [vmem:[#allocation10 + $0x90] sm:$0xff]
          %v949 = vld [vmem:[#allocation10 + $0x98] sm:$0xf]
          %v950 = vld [vmem:[#allocation10 + $0x9c] sm:$0xff]
          %v951 = vld [vmem:[#allocation10 + $0xa4] sm:$0xf]
          %v952 = vld [vmem:[#allocation10 + $0xa8] sm:$0xff]
          %v953 = vld [vmem:[#allocation10 + $0xb0] sm:$0xf]
          %v954 = vld [vmem:[#allocation10 + $0xb4] sm:$0xff]
          %v955 = vld [vmem:[#allocation10 + $0xbc] sm:$0xf]
          %v956 = vld [vmem:[#allocation13] sm:$0x7]
          %v958 = vlaneseq
          %v959 = vshrl.u32 %v958, 7
          %v960 = vsub.s32 0, %v959
          %v961 = vrot.slane %v956, %v960
          %v962 = vlaneseq
          %v963 = vshrl.u32 %v962, 7
          %v964 = vsub.s32 1, %v963
          %v965 = vrot.slane %v956, %v964
          %v966 = vlaneseq
          %v967 = vshrl.u32 %v966, 7
          %v968 = vsub.s32 2, %v967
          %v969 = vrot.slane %v956, %v968
          %v1005 = vunpack.c.l.b16 %v924
          %v1006 = vunpack.c.h.b16 %v924
          %v1007 = vunpack.c.l.b16 %v925
          %v1008 = vunpack.c.l.b16 %v926
          %v1009 = vunpack.c.h.b16 %v926
          %v1010 = vunpack.c.l.b16 %v927
          %v1011 = vunpack.c.l.b16 %v928
          %v1012 = vunpack.c.h.b16 %v928
          %v1013 = vunpack.c.l.b16 %v929
          %v1014 = vunpack.c.l.b16 %v930
          %v1015 = vunpack.c.h.b16 %v930
          %v1016 = vunpack.c.l.b16 %v931
          %v1017 = vunpack.c.l.b16 %v932
          %v1018 = vunpack.c.h.b16 %v932
          %v1019 = vunpack.c.l.b16 %v933
          %v1020 = vunpack.c.l.b16 %v934
          %v1021 = vunpack.c.h.b16 %v934
          %v1022 = vunpack.c.l.b16 %v935
          %v1023 = vunpack.c.l.b16 %v936
          %v1024 = vunpack.c.h.b16 %v936
          %v1025 = vunpack.c.l.b16 %v937
          %v1026 = vunpack.c.l.b16 %v938
          %v1027 = vunpack.c.h.b16 %v938
          %v1028 = vunpack.c.l.b16 %v939
          %v1029 = vunpack.c.l.b16 %v940
          %v1030 = vunpack.c.h.b16 %v940
          %v1031 = vunpack.c.l.b16 %v941
          %v1032 = vunpack.c.l.b16 %v942
          %v1033 = vunpack.c.h.b16 %v942
          %v1034 = vunpack.c.l.b16 %v943
          %v1035 = vunpack.c.l.b16 %v944
          %v1036 = vunpack.c.h.b16 %v944
          %v1037 = vunpack.c.l.b16 %v945
          %v1038 = vunpack.c.l.b16 %v946
          %v1039 = vunpack.c.h.b16 %v946
          %v1040 = vunpack.c.l.b16 %v947
          %v1041 = vunpack.c.l.b16 %v948
          %v1042 = vunpack.c.h.b16 %v948
          %v1043 = vunpack.c.l.b16 %v949
          %v1044 = vunpack.c.l.b16 %v950
          %v1045 = vunpack.c.h.b16 %v950
          %v1046 = vunpack.c.l.b16 %v951
          %v1047 = vunpack.c.l.b16 %v952
          %v1048 = vunpack.c.h.b16 %v952
          %v1049 = vunpack.c.l.b16 %v953
          %v1050 = vunpack.c.l.b16 %v954
          %v1051 = vunpack.c.h.b16 %v954
          %v1052 = vunpack.c.l.b16 %v955
          %v1053 = vpack.c.b16 %v1008, %v1005
          %v1054 = vpack.c.b16 %v1009, %v1006
          %v1055 = vpack.c.b16 %v1010, %v1007
          %v1056 = vpack.c.b16 %v1014, %v1011
          %v1057 = vpack.c.b16 %v1015, %v1012
          %v1058 = vpack.c.b16 %v1016, %v1013
          %v1059 = vpack.c.b16 %v1020, %v1017
          %v1060 = vpack.c.b16 %v1021, %v1018
          %v1061 = vpack.c.b16 %v1022, %v1019
          %v1062 = vpack.c.b16 %v1026, %v1023
          %v1063 = vpack.c.b16 %v1027, %v1024
          %v1064 = vpack.c.b16 %v1028, %v1025
          %v1065 = vpack.c.b16 %v1032, %v1029
          %v1066 = vpack.c.b16 %v1033, %v1030
          %v1067 = vpack.c.b16 %v1034, %v1031
          %v1068 = vpack.c.b16 %v1038, %v1035
          %v1069 = vpack.c.b16 %v1039, %v1036
          %v1070 = vpack.c.b16 %v1040, %v1037
          %v1071 = vpack.c.b16 %v1044, %v1041
          %v1072 = vpack.c.b16 %v1045, %v1042
          %v1073 = vpack.c.b16 %v1046, %v1043
          %v1074 = vpack.c.b16 %v1050, %v1047
          %v1075 = vpack.c.b16 %v1051, %v1048
          %v1076 = vpack.c.b16 %v1052, %v1049
          %1101 = vmatprep.subr.bf16.mxu0 %v1054
          %1102 = vmatpush1.bf16.msra.mxu0 %v1053
          %1103 = vmatprep.subr.bf16.mxu0 %v1057
          %1104 = vmatpush1.bf16.msra.mxu0 %v1056
          %1105 = vmatprep.subr.bf16.mxu0 %v1060
          %1106 = vmatpush1.bf16.msra.mxu0 %v1059
          %1107 = vmatprep.subr.bf16.mxu0 %v1063
          %1108 = vmatpush1.bf16.msra.mxu0 %v1062
          %1109 = vmatprep.subr.bf16.mxu0 %v1066
          %1110 = vmatpush1.bf16.msra.mxu0 %v1065
          %1111 = vmatprep.subr.bf16.mxu0 %v1069
          %1112 = vmatpush1.bf16.msra.mxu0 %v1068
          %1113 = vmatprep.subr.bf16.mxu0 %v1072
          %1114 = vmatpush1.bf16.msra.mxu0 %v1071
          %1115 = vmatprep.subr.bf16.mxu0 %v1075
          %1116 = vmatpush1.bf16.msra.mxu0 %v1074
          %1117 = vmatprep.subr.bf16.mxu0 0
          %1118 = vmatpush1.bf16.msra.mxu0 0
          %1119 = vmatprep.subr.bf16.mxu0 0
          %1120 = vmatpush1.bf16.msra.mxu0 0
          %1121 = vmatprep.subr.bf16.mxu0 0
          %1122 = vmatpush1.bf16.msra.mxu0 0
          %1123 = vmatprep.subr.bf16.mxu0 0
          %1124 = vmatpush1.bf16.msra.mxu0 0
          %1125 = vmatprep.subr.bf16.mxu0 0
          %1126 = vmatpush1.bf16.msra.mxu0 0
          %1127 = vmatprep.subr.bf16.mxu0 0
          %1128 = vmatpush1.bf16.msra.mxu0 0
          %1129 = vmatprep.subr.bf16.mxu0 0
          %1130 = vmatpush1.bf16.msra.mxu0 0
          %1131 = vmatprep.subr.bf16.mxu0 0
          %1132 = vmatpush1.bf16.msra.mxu0 0
          %1133 = vmatprep.mubr.bf16.mxu0 0
          %1134 = vmatmul.mubr.bf16.gmra.mrb[0].mxu0 %v923
          %v1135 = vpop.f32.mrb[0].mxu0
          %v1136 = vadd.f32 %v961, %v1135
          %v1137 = vpop.f32.mrb[0].mxu0
          %v1138 = vadd.f32 %v965, %v1137
          %v1139 = vpop.f32.mrb[0].mxu0
          %v1140 = vpop.f32.mrb[0].mxu0
          %1141 = vdwg.mxu0
          %1142 = vmatprep.subr.bf16.mxu0 0
          %1143 = vmatpush1.bf16.msra.mxu0 %v1055
          %1144 = vmatprep.subr.bf16.mxu0 0
          %1145 = vmatpush1.bf16.msra.mxu0 %v1058
          %1146 = vmatprep.subr.bf16.mxu0 0
          %1147 = vmatpush1.bf16.msra.mxu0 %v1061
          %1148 = vmatprep.subr.bf16.mxu0 0
          %1149 = vmatpush1.bf16.msra.mxu0 %v1064
          %1150 = vmatprep.subr.bf16.mxu0 0
          %1151 = vmatpush1.bf16.msra.mxu0 %v1067
          %1152 = vmatprep.subr.bf16.mxu0 0
          %1153 = vmatpush1.bf16.msra.mxu0 %v1070
          %1154 = vmatprep.subr.bf16.mxu0 0
          %1155 = vmatpush1.bf16.msra.mxu0 %v1073
          %1156 = vmatprep.subr.bf16.mxu0 0
          %1157 = vmatpush1.bf16.msra.mxu0 %v1076
          %1158 = vmatprep.subr.bf16.mxu0 0
          %1159 = vmatpush1.bf16.msra.mxu0 0
          %1160 = vmatprep.subr.bf16.mxu0 0
          %1161 = vmatpush1.bf16.msra.mxu0 0
          %1162 = vmatprep.subr.bf16.mxu0 0
          %1163 = vmatpush1.bf16.msra.mxu0 0
          %1164 = vmatprep.subr.bf16.mxu0 0
          %1165 = vmatpush1.bf16.msra.mxu0 0
          %1166 = vmatprep.subr.bf16.mxu0 0
          %1167 = vmatpush1.bf16.msra.mxu0 0
          %1168 = vmatprep.subr.bf16.mxu0 0
          %1169 = vmatpush1.bf16.msra.mxu0 0
          %1170 = vmatprep.subr.bf16.mxu0 0
          %1171 = vmatpush1.bf16.msra.mxu0 0
          %1172 = vmatprep.subr.bf16.mxu0 0
          %1173 = vmatpush1.bf16.msra.mxu0 0
          %1174 = vmatprep.mubr.bf16.mxu0 0
          %1175 = vmatmul.mubr.bf16.gmra.mrb[0].mxu0 %v923
          %v1176 = vpop.f32.mrb[0].mxu0
          %v1177 = vadd.f32 %v969, %v1176
          %v1178 = vpop.f32.mrb[0].mxu0
          %v1179 = vpop.f32.mrb[0].mxu0
          %v1180 = vpop.f32.mrb[0].mxu0
          %1181 = vdwg.mxu0
          %v1182 = vadd.f32 %v1136, %v859
          %v1183 = vxor.u32 %v1182, 2147483648
          %v1184 = vmul.f32 %v1183, 1.442695
          %v1185 = vpow.pop %v1184
          %v1186 = vadd.f32 %v1185, 1.0
          %v1187 = vrcp.pop %v1186
          %v1188 = vmul.f32 1.0, %v1187
          %v1189 = vadd.f32 %v1138, %v861
          %v1190 = vxor.u32 %v1189, 2147483648
          %v1191 = vmul.f32 %v1190, 1.442695
          %v1192 = vpow.pop %v1191
          %v1193 = vadd.f32 %v1192, 1.0
          %v1194 = vrcp.pop %v1193
          %v1195 = vmul.f32 1.0, %v1194
          %v1196 = vmul.f32 %v1188, %v900
          %v1197 = vadd.f32 %v1177, %v1196
          %v1198 = vtanh.pop %v1197
          %v1199 = vsub.f32 1.0, %v1195
          %v1200 = vmul.f32 %v1199, %v1198
          %v1201 = vmul.f32 %v1195, %v645
          %v1202 = vadd.f32 %v1200, %v1201
          %1203 = vst [vmem:[%s513] sm:$0xff] %v1202
          %v1204 = vpack.c.bf16 %v1202, %v1202
          %1205 = vst [vmem:[#allocation3] sm:$0xf] %v1204
        $region88: #{decoder_rnn_forward.1} parent=51 // pred_fallthru
          _
        %v1206 = vld [vmem:[#allocation3] sm:$0xf]
        %v1207 = vld [vmem:[%s447] sm:$0xff]
        %v1208 = vld [vmem:[%s447 + $0x8] sm:$0xff]
        %v1209 = vld [vmem:[%s447 + $0x10] sm:$0xff]
        %v1210 = vld [vmem:[%s447 + $0x18] sm:$0xff]
        %v1211 = vld [vmem:[%s447 + $0x20] sm:$0xff]
        %v1212 = vld [vmem:[%s447 + $0x28] sm:$0xff]
        %v1213 = vld [vmem:[%s447 + $0x30] sm:$0xff]
        %v1214 = vld [vmem:[%s447 + $0x38] sm:$0xff]
        %v1215 = vld [vmem:[%s447 + $0x40] sm:$0xff]
        %v1216 = vld [vmem:[%s447 + $0x48] sm:$0xff]
        %v1217 = vld [vmem:[%s447 + $0x50] sm:$0xff]
        %v1218 = vld [vmem:[%s447 + $0x58] sm:$0xff]
        %v1219 = vld [vmem:[%s447 + $0x60] sm:$0xff]
        %v1220 = vld [vmem:[%s447 + $0x68] sm:$0xff]
        %v1221 = vld [vmem:[%s447 + $0x70] sm:$0xff]
        %v1222 = vld [vmem:[%s447 + $0x78] sm:$0xff]
        %v1223 = vld [vmem:[%s447 + $0x80] sm:$0xff]
        %v1224 = vld [vmem:[%s447 + $0x88] sm:$0xff]
        %v1225 = vld [vmem:[%s447 + $0x90] sm:$0xff]
        %v1226 = vld [vmem:[%s447 + $0x98] sm:$0xff]
        %v1227 = vld [vmem:[%s447 + $0xa0] sm:$0xff]
        %v1228 = vld [vmem:[%s447 + $0xa8] sm:$0xff]
        %v1229 = vld [vmem:[%s447 + $0xb0] sm:$0xff]
        %v1230 = vld [vmem:[%s447 + $0xb8] sm:$0xff]
        %v1231 = vld [vmem:[%s447 + $0xc0] sm:$0xff]
        %v1232 = vld [vmem:[%s447 + $0xc8] sm:$0xff]
        %v1233 = vld [vmem:[%s447 + $0xd0] sm:$0xff]
        %v1234 = vld [vmem:[%s447 + $0xd8] sm:$0xff]
        %v1235 = vld [vmem:[%s447 + $0xe0] sm:$0xff]
        %v1236 = vld [vmem:[%s447 + $0xe8] sm:$0xff]
        %v1237 = vld [vmem:[%s447 + $0xf0] sm:$0xff]
        %v1238 = vld [vmem:[%s447 + $0xf8] sm:$0xff]
        %v1239 = vld [vmem:[%s447 + $0x100] sm:$0xff]
        %v1240 = vld [vmem:[%s447 + $0x108] sm:$0xff]
        %v1241 = vld [vmem:[%s447 + $0x110] sm:$0xff]
        %v1242 = vld [vmem:[%s447 + $0x118] sm:$0xff]
        %v1243 = vld [vmem:[%s447 + $0x120] sm:$0xff]
        %v1244 = vld [vmem:[%s447 + $0x128] sm:$0xff]
        %v1245 = vld [vmem:[%s447 + $0x130] sm:$0xff]
        %v1246 = vld [vmem:[%s447 + $0x138] sm:$0xff]
        %v1247 = vld [vmem:[%s447 + $0x140] sm:$0xff]
        %v1248 = vld [vmem:[%s447 + $0x148] sm:$0xff]
        %v1249 = vld [vmem:[%s447 + $0x150] sm:$0xff]
        %v1250 = vld [vmem:[%s447 + $0x158] sm:$0xff]
        %v1251 = vld [vmem:[%s447 + $0x160] sm:$0xff]
        %v1252 = vld [vmem:[%s447 + $0x168] sm:$0xff]
        %v1253 = vld [vmem:[%s447 + $0x170] sm:$0xff]
        %v1254 = vld [vmem:[%s447 + $0x178] sm:$0xff]
        %v1255 = vld [vmem:[%s447 + $0x180] sm:$0xff]
        %v1256 = vld [vmem:[%s447 + $0x188] sm:$0xff]
        %v1257 = vld [vmem:[%s447 + $0x190] sm:$0xff]
        %v1258 = vld [vmem:[%s447 + $0x198] sm:$0xff]
        %v1259 = vld [vmem:[%s447 + $0x1a0] sm:$0xff]
        %v1260 = vld [vmem:[%s447 + $0x1a8] sm:$0xff]
        %v1261 = vld [vmem:[%s447 + $0x1b0] sm:$0xff]
        %v1262 = vld [vmem:[%s447 + $0x1b8] sm:$0xff]
        %v1263 = vld [vmem:[%s447 + $0x1c0] sm:$0xff]
        %v1264 = vld [vmem:[%s447 + $0x1c8] sm:$0xff]
        %v1265 = vld [vmem:[%s447 + $0x1d0] sm:$0xff]
        %v1266 = vld [vmem:[%s447 + $0x1d8] sm:$0xff]
        %v1267 = vld [vmem:[%s447 + $0x1e0] sm:$0xff]
        %v1268 = vld [vmem:[%s447 + $0x1e8] sm:$0xff]
        %v1269 = vld [vmem:[%s447 + $0x1f0] sm:$0xff]
        %v1270 = vld [vmem:[%s447 + $0x1f8] sm:$0xff]
        %v1271 = vld [vmem:[%s447 + $0x200] sm:$0xff]
        %v1272 = vld [vmem:[%s447 + $0x208] sm:$0xff]
        %v1273 = vld [vmem:[%s447 + $0x210] sm:$0xff]
        %v1274 = vld [vmem:[%s447 + $0x218] sm:$0xff]
        %v1275 = vld [vmem:[%s447 + $0x220] sm:$0xff]
        %v1276 = vld [vmem:[%s447 + $0x228] sm:$0xff]
        %v1277 = vld [vmem:[%s447 + $0x230] sm:$0xff]
        %v1278 = vld [vmem:[%s447 + $0x238] sm:$0xff]
        %v1279 = vld [vmem:[%s447 + $0x240] sm:$0xff]
        %v1280 = vld [vmem:[%s447 + $0x248] sm:$0xff]
        %v1281 = vld [vmem:[%s447 + $0x250] sm:$0xff]
        %v1282 = vld [vmem:[%s447 + $0x258] sm:$0xff]
        %v1283 = vld [vmem:[%s447 + $0x260] sm:$0xff]
        %v1284 = vld [vmem:[%s447 + $0x268] sm:$0xff]
        %v1285 = vld [vmem:[%s447 + $0x270] sm:$0xff]
        %v1286 = vld [vmem:[%s447 + $0x278] sm:$0xff]
        %v1287 = vld [vmem:[%s447 + $0x280] sm:$0xff]
        %v1288 = vld [vmem:[%s447 + $0x288] sm:$0xff]
        %v1289 = vld [vmem:[%s447 + $0x290] sm:$0xff]
        %v1290 = vld [vmem:[%s447 + $0x298] sm:$0xff]
        %v1291 = vld [vmem:[%s447 + $0x2a0] sm:$0xff]
        %v1292 = vld [vmem:[%s447 + $0x2a8] sm:$0xff]
        %v1293 = vld [vmem:[%s447 + $0x2b0] sm:$0xff]
        %v1294 = vld [vmem:[%s447 + $0x2b8] sm:$0xff]
        %v1295 = vld [vmem:[%s447 + $0x2c0] sm:$0xff]
        %v1296 = vld [vmem:[%s447 + $0x2c8] sm:$0xff]
        %v1297 = vld [vmem:[%s447 + $0x2d0] sm:$0xff]
        %v1298 = vld [vmem:[%s447 + $0x2d8] sm:$0xff]
        %v1299 = vld [vmem:[%s447 + $0x2e0] sm:$0xff]
        %v1300 = vld [vmem:[%s447 + $0x2e8] sm:$0xff]
        %v1301 = vld [vmem:[%s447 + $0x2f0] sm:$0xff]
        %v1302 = vld [vmem:[%s447 + $0x2f8] sm:$0xff]
        %v1303 = vld [vmem:[%s447 + $0x300] sm:$0xff]
        %v1304 = vld [vmem:[%s447 + $0x308] sm:$0xff]
        %v1305 = vld [vmem:[%s447 + $0x310] sm:$0xff]
        %v1306 = vld [vmem:[%s447 + $0x318] sm:$0xff]
        %v1307 = vld [vmem:[%s447 + $0x320] sm:$0xff]
        %v1308 = vld [vmem:[%s447 + $0x328] sm:$0xff]
        %v1309 = vld [vmem:[%s447 + $0x330] sm:$0xff]
        %v1310 = vld [vmem:[%s447 + $0x338] sm:$0xff]
        %v1311 = vld [vmem:[%s447 + $0x340] sm:$0xff]
        %v1312 = vld [vmem:[%s447 + $0x348] sm:$0xff]
        %v1313 = vld [vmem:[%s447 + $0x350] sm:$0xff]
        %v1314 = vld [vmem:[%s447 + $0x358] sm:$0xff]
        %v1315 = vld [vmem:[%s447 + $0x360] sm:$0xff]
        %v1316 = vld [vmem:[%s447 + $0x368] sm:$0xff]
        %v1317 = vld [vmem:[%s447 + $0x370] sm:$0xff]
        %v1318 = vld [vmem:[%s447 + $0x378] sm:$0xff]
        %v1319 = vld [vmem:[%s447 + $0x380] sm:$0xff]
        %v1320 = vld [vmem:[%s447 + $0x388] sm:$0xff]
        %v1321 = vld [vmem:[%s447 + $0x390] sm:$0xff]
        %v1322 = vld [vmem:[%s447 + $0x398] sm:$0xff]
        %v1323 = vld [vmem:[%s447 + $0x3a0] sm:$0xff]
        %v1324 = vld [vmem:[%s447 + $0x3a8] sm:$0xff]
        %v1325 = vld [vmem:[%s447 + $0x3b0] sm:$0xff]
        %v1326 = vld [vmem:[%s447 + $0x3b8] sm:$0xff]
        %v1327 = vld [vmem:[%s447 + $0x3c0] sm:$0xff]
        %v1328 = vld [vmem:[%s447 + $0x3c8] sm:$0xff]
        %v1329 = vld [vmem:[%s447 + $0x3d0] sm:$0xff]
        %v1330 = vld [vmem:[%s447 + $0x3d8] sm:$0xff]
        %v1331 = vld [vmem:[%s447 + $0x3e0] sm:$0xff]
        %v1332 = vld [vmem:[%s447 + $0x3e8] sm:$0xff]
        %v1333 = vld [vmem:[%s447 + $0x3f0] sm:$0xff]
        %v1334 = vld [vmem:[%s447 + $0x3f8] sm:$0xff]
        %v1335 = vld [vmem:[%s456] sm:$0xff]
        %v1336 = vld [vmem:[%s456 + $0x8] sm:$0xff]
        %v1339 = vlaneseq
        %v1340 = vshrl.u32 %v1339, 7
        %v1341 = vsub.s32 0, %v1340
        %v1342 = vrot.slane %v1335, %v1341
        %v1343 = vlaneseq
        %v1344 = vshrl.u32 %v1343, 7
        %v1345 = vsub.s32 1, %v1344
        %v1346 = vrot.slane %v1335, %v1345
        %v1347 = vlaneseq
        %v1348 = vshrl.u32 %v1347, 7
        %v1349 = vsub.s32 2, %v1348
        %v1350 = vrot.slane %v1335, %v1349
        %v1351 = vlaneseq
        %v1352 = vshrl.u32 %v1351, 7
        %v1353 = vsub.s32 3, %v1352
        %v1354 = vrot.slane %v1335, %v1353
        %v1355 = vlaneseq
        %v1356 = vshrl.u32 %v1355, 7
        %v1357 = vsub.s32 4, %v1356
        %v1358 = vrot.slane %v1335, %v1357
        %v1359 = vlaneseq
        %v1360 = vshrl.u32 %v1359, 7
        %v1361 = vsub.s32 5, %v1360
        %v1362 = vrot.slane %v1335, %v1361
        %v1363 = vlaneseq
        %v1364 = vshrl.u32 %v1363, 7
        %v1365 = vsub.s32 6, %v1364
        %v1366 = vrot.slane %v1335, %v1365
        %v1367 = vlaneseq
        %v1368 = vshrl.u32 %v1367, 7
        %v1369 = vsub.s32 7, %v1368
        %v1370 = vrot.slane %v1335, %v1369
        %v1371 = vlaneseq
        %v1372 = vshrl.u32 %v1371, 7
        %v1373 = vsub.s32 0, %v1372
        %v1374 = vrot.slane %v1336, %v1373
        %v1375 = vlaneseq
        %v1376 = vshrl.u32 %v1375, 7
        %v1377 = vsub.s32 1, %v1376
        %v1378 = vrot.slane %v1336, %v1377
        %v1379 = vlaneseq
        %v1380 = vshrl.u32 %v1379, 7
        %v1381 = vsub.s32 2, %v1380
        %v1382 = vrot.slane %v1336, %v1381
        %v1383 = vlaneseq
        %v1384 = vshrl.u32 %v1383, 7
        %v1385 = vsub.s32 3, %v1384
        %v1386 = vrot.slane %v1336, %v1385
        %v1387 = vlaneseq
        %v1388 = vshrl.u32 %v1387, 7
        %v1389 = vsub.s32 4, %v1388
        %v1390 = vrot.slane %v1336, %v1389
        %v1391 = vlaneseq
        %v1392 = vshrl.u32 %v1391, 7
        %v1393 = vsub.s32 5, %v1392
        %v1394 = vrot.slane %v1336, %v1393
        %v1395 = vlaneseq
        %v1396 = vshrl.u32 %v1395, 7
        %v1397 = vsub.s32 6, %v1396
        %v1398 = vrot.slane %v1336, %v1397
        %v1399 = vlaneseq
        %v1400 = vshrl.u32 %v1399, 7
        %v1401 = vsub.s32 7, %v1400
        %v1402 = vrot.slane %v1336, %v1401
        %v1547 = vunpack.c.l.b16 %v1207
        %v1548 = vunpack.c.h.b16 %v1207
        %v1549 = vunpack.c.l.b16 %v1208
        %v1550 = vunpack.c.h.b16 %v1208
        %v1551 = vunpack.c.l.b16 %v1209
        %v1552 = vunpack.c.h.b16 %v1209
        %v1553 = vunpack.c.l.b16 %v1210
        %v1554 = vunpack.c.h.b16 %v1210
        %v1555 = vunpack.c.l.b16 %v1211
        %v1556 = vunpack.c.h.b16 %v1211
        %v1557 = vunpack.c.l.b16 %v1212
        %v1558 = vunpack.c.h.b16 %v1212
        %v1559 = vunpack.c.l.b16 %v1213
        %v1560 = vunpack.c.h.b16 %v1213
        %v1561 = vunpack.c.l.b16 %v1214
        %v1562 = vunpack.c.h.b16 %v1214
        %v1563 = vunpack.c.l.b16 %v1215
        %v1564 = vunpack.c.h.b16 %v1215
        %v1565 = vunpack.c.l.b16 %v1216
        %v1566 = vunpack.c.h.b16 %v1216
        %v1567 = vunpack.c.l.b16 %v1217
        %v1568 = vunpack.c.h.b16 %v1217
        %v1569 = vunpack.c.l.b16 %v1218
        %v1570 = vunpack.c.h.b16 %v1218
        %v1571 = vunpack.c.l.b16 %v1219
        %v1572 = vunpack.c.h.b16 %v1219
        %v1573 = vunpack.c.l.b16 %v1220
        %v1574 = vunpack.c.h.b16 %v1220
        %v1575 = vunpack.c.l.b16 %v1221
        %v1576 = vunpack.c.h.b16 %v1221
        %v1577 = vunpack.c.l.b16 %v1222
        %v1578 = vunpack.c.h.b16 %v1222
        %v1579 = vunpack.c.l.b16 %v1223
        %v1580 = vunpack.c.h.b16 %v1223
        %v1581 = vunpack.c.l.b16 %v1224
        %v1582 = vunpack.c.h.b16 %v1224
        %v1583 = vunpack.c.l.b16 %v1225
        %v1584 = vunpack.c.h.b16 %v1225
        %v1585 = vunpack.c.l.b16 %v1226
        %v1586 = vunpack.c.h.b16 %v1226
        %v1587 = vunpack.c.l.b16 %v1227
        %v1588 = vunpack.c.h.b16 %v1227
        %v1589 = vunpack.c.l.b16 %v1228
        %v1590 = vunpack.c.h.b16 %v1228
        %v1591 = vunpack.c.l.b16 %v1229
        %v1592 = vunpack.c.h.b16 %v1229
        %v1593 = vunpack.c.l.b16 %v1230
        %v1594 = vunpack.c.h.b16 %v1230
        %v1595 = vunpack.c.l.b16 %v1231
        %v1596 = vunpack.c.h.b16 %v1231
        %v1597 = vunpack.c.l.b16 %v1232
        %v1598 = vunpack.c.h.b16 %v1232
        %v1599 = vunpack.c.l.b16 %v1233
        %v1600 = vunpack.c.h.b16 %v1233
        %v1601 = vunpack.c.l.b16 %v1234
        %v1602 = vunpack.c.h.b16 %v1234
        %v1603 = vunpack.c.l.b16 %v1235
        %v1604 = vunpack.c.h.b16 %v1235
        %v1605 = vunpack.c.l.b16 %v1236
        %v1606 = vunpack.c.h.b16 %v1236
        %v1607 = vunpack.c.l.b16 %v1237
        %v1608 = vunpack.c.h.b16 %v1237
        %v1609 = vunpack.c.l.b16 %v1238
        %v1610 = vunpack.c.h.b16 %v1238
        %v1611 = vunpack.c.l.b16 %v1239
        %v1612 = vunpack.c.h.b16 %v1239
        %v1613 = vunpack.c.l.b16 %v1240
        %v1614 = vunpack.c.h.b16 %v1240
        %v1615 = vunpack.c.l.b16 %v1241
        %v1616 = vunpack.c.h.b16 %v1241
        %v1617 = vunpack.c.l.b16 %v1242
        %v1618 = vunpack.c.h.b16 %v1242
        %v1619 = vunpack.c.l.b16 %v1243
        %v1620 = vunpack.c.h.b16 %v1243
        %v1621 = vunpack.c.l.b16 %v1244
        %v1622 = vunpack.c.h.b16 %v1244
        %v1623 = vunpack.c.l.b16 %v1245
        %v1624 = vunpack.c.h.b16 %v1245
        %v1625 = vunpack.c.l.b16 %v1246
        %v1626 = vunpack.c.h.b16 %v1246
        %v1627 = vunpack.c.l.b16 %v1247
        %v1628 = vunpack.c.h.b16 %v1247
        %v1629 = vunpack.c.l.b16 %v1248
        %v1630 = vunpack.c.h.b16 %v1248
        %v1631 = vunpack.c.l.b16 %v1249
        %v1632 = vunpack.c.h.b16 %v1249
        %v1633 = vunpack.c.l.b16 %v1250
        %v1634 = vunpack.c.h.b16 %v1250
        %v1635 = vunpack.c.l.b16 %v1251
        %v1636 = vunpack.c.h.b16 %v1251
        %v1637 = vunpack.c.l.b16 %v1252
        %v1638 = vunpack.c.h.b16 %v1252
        %v1639 = vunpack.c.l.b16 %v1253
        %v1640 = vunpack.c.h.b16 %v1253
        %v1641 = vunpack.c.l.b16 %v1254
        %v1642 = vunpack.c.h.b16 %v1254
        %v1643 = vunpack.c.l.b16 %v1255
        %v1644 = vunpack.c.h.b16 %v1255
        %v1645 = vunpack.c.l.b16 %v1256
        %v1646 = vunpack.c.h.b16 %v1256
        %v1647 = vunpack.c.l.b16 %v1257
        %v1648 = vunpack.c.h.b16 %v1257
        %v1649 = vunpack.c.l.b16 %v1258
        %v1650 = vunpack.c.h.b16 %v1258
        %v1651 = vunpack.c.l.b16 %v1259
        %v1652 = vunpack.c.h.b16 %v1259
        %v1653 = vunpack.c.l.b16 %v1260
        %v1654 = vunpack.c.h.b16 %v1260
        %v1655 = vunpack.c.l.b16 %v1261
        %v1656 = vunpack.c.h.b16 %v1261
        %v1657 = vunpack.c.l.b16 %v1262
        %v1658 = vunpack.c.h.b16 %v1262
        %v1659 = vunpack.c.l.b16 %v1263
        %v1660 = vunpack.c.h.b16 %v1263
        %v1661 = vunpack.c.l.b16 %v1264
        %v1662 = vunpack.c.h.b16 %v1264
        %v1663 = vunpack.c.l.b16 %v1265
        %v1664 = vunpack.c.h.b16 %v1265
        %v1665 = vunpack.c.l.b16 %v1266
        %v1666 = vunpack.c.h.b16 %v1266
        %v1667 = vunpack.c.l.b16 %v1267
        %v1668 = vunpack.c.h.b16 %v1267
        %v1669 = vunpack.c.l.b16 %v1268
        %v1670 = vunpack.c.h.b16 %v1268
        %v1671 = vunpack.c.l.b16 %v1269
        %v1672 = vunpack.c.h.b16 %v1269
        %v1673 = vunpack.c.l.b16 %v1270
        %v1674 = vunpack.c.h.b16 %v1270
        %v1675 = vunpack.c.l.b16 %v1271
        %v1676 = vunpack.c.h.b16 %v1271
        %v1677 = vunpack.c.l.b16 %v1272
        %v1678 = vunpack.c.h.b16 %v1272
        %v1679 = vunpack.c.l.b16 %v1273
        %v1680 = vunpack.c.h.b16 %v1273
        %v1681 = vunpack.c.l.b16 %v1274
        %v1682 = vunpack.c.h.b16 %v1274
        %v1683 = vunpack.c.l.b16 %v1275
        %v1684 = vunpack.c.h.b16 %v1275
        %v1685 = vunpack.c.l.b16 %v1276
        %v1686 = vunpack.c.h.b16 %v1276
        %v1687 = vunpack.c.l.b16 %v1277
        %v1688 = vunpack.c.h.b16 %v1277
        %v1689 = vunpack.c.l.b16 %v1278
        %v1690 = vunpack.c.h.b16 %v1278
        %v1691 = vunpack.c.l.b16 %v1279
        %v1692 = vunpack.c.h.b16 %v1279
        %v1693 = vunpack.c.l.b16 %v1280
        %v1694 = vunpack.c.h.b16 %v1280
        %v1695 = vunpack.c.l.b16 %v1281
        %v1696 = vunpack.c.h.b16 %v1281
        %v1697 = vunpack.c.l.b16 %v1282
        %v1698 = vunpack.c.h.b16 %v1282
        %v1699 = vunpack.c.l.b16 %v1283
        %v1700 = vunpack.c.h.b16 %v1283
        %v1701 = vunpack.c.l.b16 %v1284
        %v1702 = vunpack.c.h.b16 %v1284
        %v1703 = vunpack.c.l.b16 %v1285
        %v1704 = vunpack.c.h.b16 %v1285
        %v1705 = vunpack.c.l.b16 %v1286
        %v1706 = vunpack.c.h.b16 %v1286
        %v1707 = vunpack.c.l.b16 %v1287
        %v1708 = vunpack.c.h.b16 %v1287
        %v1709 = vunpack.c.l.b16 %v1288
        %v1710 = vunpack.c.h.b16 %v1288
        %v1711 = vunpack.c.l.b16 %v1289
        %v1712 = vunpack.c.h.b16 %v1289
        %v1713 = vunpack.c.l.b16 %v1290
        %v1714 = vunpack.c.h.b16 %v1290
        %v1715 = vunpack.c.l.b16 %v1291
        %v1716 = vunpack.c.h.b16 %v1291
        %v1717 = vunpack.c.l.b16 %v1292
        %v1718 = vunpack.c.h.b16 %v1292
        %v1719 = vunpack.c.l.b16 %v1293
        %v1720 = vunpack.c.h.b16 %v1293
        %v1721 = vunpack.c.l.b16 %v1294
        %v1722 = vunpack.c.h.b16 %v1294
        %v1723 = vunpack.c.l.b16 %v1295
        %v1724 = vunpack.c.h.b16 %v1295
        %v1725 = vunpack.c.l.b16 %v1296
        %v1726 = vunpack.c.h.b16 %v1296
        %v1727 = vunpack.c.l.b16 %v1297
        %v1728 = vunpack.c.h.b16 %v1297
        %v1729 = vunpack.c.l.b16 %v1298
        %v1730 = vunpack.c.h.b16 %v1298
        %v1731 = vunpack.c.l.b16 %v1299
        %v1732 = vunpack.c.h.b16 %v1299
        %v1733 = vunpack.c.l.b16 %v1300
        %v1734 = vunpack.c.h.b16 %v1300
        %v1735 = vunpack.c.l.b16 %v1301
        %v1736 = vunpack.c.h.b16 %v1301
        %v1737 = vunpack.c.l.b16 %v1302
        %v1738 = vunpack.c.h.b16 %v1302
        %v1739 = vunpack.c.l.b16 %v1303
        %v1740 = vunpack.c.h.b16 %v1303
        %v1741 = vunpack.c.l.b16 %v1304
        %v1742 = vunpack.c.h.b16 %v1304
        %v1743 = vunpack.c.l.b16 %v1305
        %v1744 = vunpack.c.h.b16 %v1305
        %v1745 = vunpack.c.l.b16 %v1306
        %v1746 = vunpack.c.h.b16 %v1306
        %v1747 = vunpack.c.l.b16 %v1307
        %v1748 = vunpack.c.h.b16 %v1307
        %v1749 = vunpack.c.l.b16 %v1308
        %v1750 = vunpack.c.h.b16 %v1308
        %v1751 = vunpack.c.l.b16 %v1309
        %v1752 = vunpack.c.h.b16 %v1309
        %v1753 = vunpack.c.l.b16 %v1310
        %v1754 = vunpack.c.h.b16 %v1310
        %v1755 = vunpack.c.l.b16 %v1311
        %v1756 = vunpack.c.h.b16 %v1311
        %v1757 = vunpack.c.l.b16 %v1312
        %v1758 = vunpack.c.h.b16 %v1312
        %v1759 = vunpack.c.l.b16 %v1313
        %v1760 = vunpack.c.h.b16 %v1313
        %v1761 = vunpack.c.l.b16 %v1314
        %v1762 = vunpack.c.h.b16 %v1314
        %v1763 = vunpack.c.l.b16 %v1315
        %v1764 = vunpack.c.h.b16 %v1315
        %v1765 = vunpack.c.l.b16 %v1316
        %v1766 = vunpack.c.h.b16 %v1316
        %v1767 = vunpack.c.l.b16 %v1317
        %v1768 = vunpack.c.h.b16 %v1317
        %v1769 = vunpack.c.l.b16 %v1318
        %v1770 = vunpack.c.h.b16 %v1318
        %v1771 = vunpack.c.l.b16 %v1319
        %v1772 = vunpack.c.h.b16 %v1319
        %v1773 = vunpack.c.l.b16 %v1320
        %v1774 = vunpack.c.h.b16 %v1320
        %v1775 = vunpack.c.l.b16 %v1321
        %v1776 = vunpack.c.h.b16 %v1321
        %v1777 = vunpack.c.l.b16 %v1322
        %v1778 = vunpack.c.h.b16 %v1322
        %v1779 = vunpack.c.l.b16 %v1323
        %v1780 = vunpack.c.h.b16 %v1323
        %v1781 = vunpack.c.l.b16 %v1324
        %v1782 = vunpack.c.h.b16 %v1324
        %v1783 = vunpack.c.l.b16 %v1325
        %v1784 = vunpack.c.h.b16 %v1325
        %v1785 = vunpack.c.l.b16 %v1326
        %v1786 = vunpack.c.h.b16 %v1326
        %v1787 = vunpack.c.l.b16 %v1327
        %v1788 = vunpack.c.h.b16 %v1327
        %v1789 = vunpack.c.l.b16 %v1328
        %v1790 = vunpack.c.h.b16 %v1328
        %v1791 = vunpack.c.l.b16 %v1329
        %v1792 = vunpack.c.h.b16 %v1329
        %v1793 = vunpack.c.l.b16 %v1330
        %v1794 = vunpack.c.h.b16 %v1330
        %v1795 = vunpack.c.l.b16 %v1331
        %v1796 = vunpack.c.h.b16 %v1331
        %v1797 = vunpack.c.l.b16 %v1332
        %v1798 = vunpack.c.h.b16 %v1332
        %v1799 = vunpack.c.l.b16 %v1333
        %v1800 = vunpack.c.h.b16 %v1333
        %v1801 = vunpack.c.l.b16 %v1334
        %v1802 = vunpack.c.h.b16 %v1334
        %v1803 = vpack.c.b16 %v1563, %v1547
        %v1804 = vpack.c.b16 %v1564, %v1548
        %v1805 = vpack.c.b16 %v1565, %v1549
        %v1806 = vpack.c.b16 %v1566, %v1550
        %v1807 = vpack.c.b16 %v1567, %v1551
        %v1808 = vpack.c.b16 %v1568, %v1552
        %v1809 = vpack.c.b16 %v1569, %v1553
        %v1810 = vpack.c.b16 %v1570, %v1554
        %v1811 = vpack.c.b16 %v1571, %v1555
        %v1812 = vpack.c.b16 %v1572, %v1556
        %v1813 = vpack.c.b16 %v1573, %v1557
        %v1814 = vpack.c.b16 %v1574, %v1558
        %v1815 = vpack.c.b16 %v1575, %v1559
        %v1816 = vpack.c.b16 %v1576, %v1560
        %v1817 = vpack.c.b16 %v1577, %v1561
        %v1818 = vpack.c.b16 %v1578, %v1562
        %v1819 = vpack.c.b16 %v1595, %v1579
        %v1820 = vpack.c.b16 %v1596, %v1580
        %v1821 = vpack.c.b16 %v1597, %v1581
        %v1822 = vpack.c.b16 %v1598, %v1582
        %v1823 = vpack.c.b16 %v1599, %v1583
        %v1824 = vpack.c.b16 %v1600, %v1584
        %v1825 = vpack.c.b16 %v1601, %v1585
        %v1826 = vpack.c.b16 %v1602, %v1586
        %v1827 = vpack.c.b16 %v1603, %v1587
        %v1828 = vpack.c.b16 %v1604, %v1588
        %v1829 = vpack.c.b16 %v1605, %v1589
        %v1830 = vpack.c.b16 %v1606, %v1590
        %v1831 = vpack.c.b16 %v1607, %v1591
        %v1832 = vpack.c.b16 %v1608, %v1592
        %v1833 = vpack.c.b16 %v1609, %v1593
        %v1834 = vpack.c.b16 %v1610, %v1594
        %v1835 = vpack.c.b16 %v1627, %v1611
        %v1836 = vpack.c.b16 %v1628, %v1612
        %v1837 = vpack.c.b16 %v1629, %v1613
        %v1838 = vpack.c.b16 %v1630, %v1614
        %v1839 = vpack.c.b16 %v1631, %v1615
        %v1840 = vpack.c.b16 %v1632, %v1616
        %v1841 = vpack.c.b16 %v1633, %v1617
        %v1842 = vpack.c.b16 %v1634, %v1618
        %v1843 = vpack.c.b16 %v1635, %v1619
        %v1844 = vpack.c.b16 %v1636, %v1620
        %v1845 = vpack.c.b16 %v1637, %v1621
        %v1846 = vpack.c.b16 %v1638, %v1622
        %v1847 = vpack.c.b16 %v1639, %v1623
        %v1848 = vpack.c.b16 %v1640, %v1624
        %v1849 = vpack.c.b16 %v1641, %v1625
        %v1850 = vpack.c.b16 %v1642, %v1626
        %v1851 = vpack.c.b16 %v1659, %v1643
        %v1852 = vpack.c.b16 %v1660, %v1644
        %v1853 = vpack.c.b16 %v1661, %v1645
        %v1854 = vpack.c.b16 %v1662, %v1646
        %v1855 = vpack.c.b16 %v1663, %v1647
        %v1856 = vpack.c.b16 %v1664, %v1648
        %v1857 = vpack.c.b16 %v1665, %v1649
        %v1858 = vpack.c.b16 %v1666, %v1650
        %v1859 = vpack.c.b16 %v1667, %v1651
        %v1860 = vpack.c.b16 %v1668, %v1652
        %v1861 = vpack.c.b16 %v1669, %v1653
        %v1862 = vpack.c.b16 %v1670, %v1654
        %v1863 = vpack.c.b16 %v1671, %v1655
        %v1864 = vpack.c.b16 %v1672, %v1656
        %v1865 = vpack.c.b16 %v1673, %v1657
        %v1866 = vpack.c.b16 %v1674, %v1658
        %v1867 = vpack.c.b16 %v1691, %v1675
        %v1868 = vpack.c.b16 %v1692, %v1676
        %v1869 = vpack.c.b16 %v1693, %v1677
        %v1870 = vpack.c.b16 %v1694, %v1678
        %v1871 = vpack.c.b16 %v1695, %v1679
        %v1872 = vpack.c.b16 %v1696, %v1680
        %v1873 = vpack.c.b16 %v1697, %v1681
        %v1874 = vpack.c.b16 %v1698, %v1682
        %v1875 = vpack.c.b16 %v1699, %v1683
        %v1876 = vpack.c.b16 %v1700, %v1684
        %v1877 = vpack.c.b16 %v1701, %v1685
        %v1878 = vpack.c.b16 %v1702, %v1686
        %v1879 = vpack.c.b16 %v1703, %v1687
        %v1880 = vpack.c.b16 %v1704, %v1688
        %v1881 = vpack.c.b16 %v1705, %v1689
        %v1882 = vpack.c.b16 %v1706, %v1690
        %v1883 = vpack.c.b16 %v1723, %v1707
        %v1884 = vpack.c.b16 %v1724, %v1708
        %v1885 = vpack.c.b16 %v1725, %v1709
        %v1886 = vpack.c.b16 %v1726, %v1710
        %v1887 = vpack.c.b16 %v1727, %v1711
        %v1888 = vpack.c.b16 %v1728, %v1712
        %v1889 = vpack.c.b16 %v1729, %v1713
        %v1890 = vpack.c.b16 %v1730, %v1714
        %v1891 = vpack.c.b16 %v1731, %v1715
        %v1892 = vpack.c.b16 %v1732, %v1716
        %v1893 = vpack.c.b16 %v1733, %v1717
        %v1894 = vpack.c.b16 %v1734, %v1718
        %v1895 = vpack.c.b16 %v1735, %v1719
        %v1896 = vpack.c.b16 %v1736, %v1720
        %v1897 = vpack.c.b16 %v1737, %v1721
        %v1898 = vpack.c.b16 %v1738, %v1722
        %v1899 = vpack.c.b16 %v1755, %v1739
        %v1900 = vpack.c.b16 %v1756, %v1740
        %v1901 = vpack.c.b16 %v1757, %v1741
        %v1902 = vpack.c.b16 %v1758, %v1742
        %v1903 = vpack.c.b16 %v1759, %v1743
        %v1904 = vpack.c.b16 %v1760, %v1744
        %v1905 = vpack.c.b16 %v1761, %v1745
        %v1906 = vpack.c.b16 %v1762, %v1746
        %v1907 = vpack.c.b16 %v1763, %v1747
        %v1908 = vpack.c.b16 %v1764, %v1748
        %v1909 = vpack.c.b16 %v1765, %v1749
        %v1910 = vpack.c.b16 %v1766, %v1750
        %v1911 = vpack.c.b16 %v1767, %v1751
        %v1912 = vpack.c.b16 %v1768, %v1752
        %v1913 = vpack.c.b16 %v1769, %v1753
        %v1914 = vpack.c.b16 %v1770, %v1754
        %v1915 = vpack.c.b16 %v1787, %v1771
        %v1916 = vpack.c.b16 %v1788, %v1772
        %v1917 = vpack.c.b16 %v1789, %v1773
        %v1918 = vpack.c.b16 %v1790, %v1774
        %v1919 = vpack.c.b16 %v1791, %v1775
        %v1920 = vpack.c.b16 %v1792, %v1776
        %v1921 = vpack.c.b16 %v1793, %v1777
        %v1922 = vpack.c.b16 %v1794, %v1778
        %v1923 = vpack.c.b16 %v1795, %v1779
        %v1924 = vpack.c.b16 %v1796, %v1780
        %v1925 = vpack.c.b16 %v1797, %v1781
        %v1926 = vpack.c.b16 %v1798, %v1782
        %v1927 = vpack.c.b16 %v1799, %v1783
        %v1928 = vpack.c.b16 %v1800, %v1784
        %v1929 = vpack.c.b16 %v1801, %v1785
        %v1930 = vpack.c.b16 %v1802, %v1786
        %2059 = vmatprep.subr.bf16.mxu0 %v1804
        %2060 = vmatpush1.bf16.msra.mxu0 %v1803
        %2061 = vmatprep.subr.bf16.mxu0 %v1820
        %2062 = vmatpush1.bf16.msra.mxu0 %v1819
        %2063 = vmatprep.subr.bf16.mxu0 %v1836
        %2064 = vmatpush1.bf16.msra.mxu0 %v1835
        %2065 = vmatprep.subr.bf16.mxu0 %v1852
        %2066 = vmatpush1.bf16.msra.mxu0 %v1851
        %2067 = vmatprep.subr.bf16.mxu0 %v1868
        %2068 = vmatpush1.bf16.msra.mxu0 %v1867
        %2069 = vmatprep.subr.bf16.mxu0 %v1884
        %2070 = vmatpush1.bf16.msra.mxu0 %v1883
        %2071 = vmatprep.subr.bf16.mxu0 %v1900
        %2072 = vmatpush1.bf16.msra.mxu0 %v1899
        %2073 = vmatprep.subr.bf16.mxu0 %v1916
        %2074 = vmatpush1.bf16.msra.mxu0 %v1915
        %2075 = vmatprep.subr.bf16.mxu0 0
        %2076 = vmatpush1.bf16.msra.mxu0 0
        %2077 = vmatprep.subr.bf16.mxu0 0
        %2078 = vmatpush1.bf16.msra.mxu0 0
        %2079 = vmatprep.subr.bf16.mxu0 0
        %2080 = vmatpush1.bf16.msra.mxu0 0
        %2081 = vmatprep.subr.bf16.mxu0 0
        %2082 = vmatpush1.bf16.msra.mxu0 0
        %2083 = vmatprep.subr.bf16.mxu0 0
        %2084 = vmatpush1.bf16.msra.mxu0 0
        %2085 = vmatprep.subr.bf16.mxu0 0
        %2086 = vmatpush1.bf16.msra.mxu0 0
        %2087 = vmatprep.subr.bf16.mxu0 0
        %2088 = vmatpush1.bf16.msra.mxu0 0
        %2089 = vmatprep.subr.bf16.mxu0 0
        %2090 = vmatpush1.bf16.msra.mxu0 0
        %2091 = vmatprep.mubr.bf16.mxu0 0
        %2092 = vmatmul.mubr.bf16.gmra.mrb[0].mxu0 %v1206
        %v2093 = vpop.f32.mrb[0].mxu0
        %v2094 = vadd.f32 %v1342, %v2093
        %v2095 = vpop.f32.mrb[0].mxu0
        %v2096 = vadd.f32 %v1346, %v2095
        %v2097 = vpop.f32.mrb[0].mxu0
        %v2098 = vpop.f32.mrb[0].mxu0
        %2099 = vdwg.mxu0
        %2100 = vmatprep.subr.bf16.mxu0 %v1806
        %2101 = vmatpush1.bf16.msra.mxu0 %v1805
        %2102 = vmatprep.subr.bf16.mxu0 %v1822
        %2103 = vmatpush1.bf16.msra.mxu0 %v1821
        %2104 = vmatprep.subr.bf16.mxu0 %v1838
        %2105 = vmatpush1.bf16.msra.mxu0 %v1837
        %2106 = vmatprep.subr.bf16.mxu0 %v1854
        %2107 = vmatpush1.bf16.msra.mxu0 %v1853
        %2108 = vmatprep.subr.bf16.mxu0 %v1870
        %2109 = vmatpush1.bf16.msra.mxu0 %v1869
        %2110 = vmatprep.subr.bf16.mxu0 %v1886
        %2111 = vmatpush1.bf16.msra.mxu0 %v1885
        %2112 = vmatprep.subr.bf16.mxu0 %v1902
        %2113 = vmatpush1.bf16.msra.mxu0 %v1901
        %2114 = vmatprep.subr.bf16.mxu0 %v1918
        %2115 = vmatpush1.bf16.msra.mxu0 %v1917
        %2116 = vmatprep.subr.bf16.mxu0 0
        %2117 = vmatpush1.bf16.msra.mxu0 0
        %2118 = vmatprep.subr.bf16.mxu0 0
        %2119 = vmatpush1.bf16.msra.mxu0 0
        %2120 = vmatprep.subr.bf16.mxu0 0
        %2121 = vmatpush1.bf16.msra.mxu0 0
        %2122 = vmatprep.subr.bf16.mxu0 0
        %2123 = vmatpush1.bf16.msra.mxu0 0
        %2124 = vmatprep.subr.bf16.mxu0 0
        %2125 = vmatpush1.bf16.msra.mxu0 0
        %2126 = vmatprep.subr.bf16.mxu0 0
        %2127 = vmatpush1.bf16.msra.mxu0 0
        %2128 = vmatprep.subr.bf16.mxu0 0
        %2129 = vmatpush1.bf16.msra.mxu0 0
        %2130 = vmatprep.subr.bf16.mxu0 0
        %2131 = vmatpush1.bf16.msra.mxu0 0
        %2132 = vmatprep.mubr.bf16.mxu0 0
        %2133 = vmatmul.mubr.bf16.gmra.mrb[0].mxu0 %v1206
        %v2134 = vpop.f32.mrb[0].mxu0
        %v2135 = vadd.f32 %v1350, %v2134
        %v2136 = vpop.f32.mrb[0].mxu0
        %v2137 = vadd.f32 %v1354, %v2136
        %v2138 = vpop.f32.mrb[0].mxu0
        %v2139 = vpop.f32.mrb[0].mxu0
        %2140 = vdwg.mxu0
        %2141 = vmatprep.subr.bf16.mxu0 %v1808
        %2142 = vmatpush1.bf16.msra.mxu0 %v1807
        %2143 = vmatprep.subr.bf16.mxu0 %v1824
        %2144 = vmatpush1.bf16.msra.mxu0 %v1823
        %2145 = vmatprep.subr.bf16.mxu0 %v1840
        %2146 = vmatpush1.bf16.msra.mxu0 %v1839
        %2147 = vmatprep.subr.bf16.mxu0 %v1856
        %2148 = vmatpush1.bf16.msra.mxu0 %v1855
        %2149 = vmatprep.subr.bf16.mxu0 %v1872
        %2150 = vmatpush1.bf16.msra.mxu0 %v1871
        %2151 = vmatprep.subr.bf16.mxu0 %v1888
        %2152 = vmatpush1.bf16.msra.mxu0 %v1887
        %2153 = vmatprep.subr.bf16.mxu0 %v1904
        %2154 = vmatpush1.bf16.msra.mxu0 %v1903
        %2155 = vmatprep.subr.bf16.mxu0 %v1920
        %2156 = vmatpush1.bf16.msra.mxu0 %v1919
        %2157 = vmatprep.subr.bf16.mxu0 0
        %2158 = vmatpush1.bf16.msra.mxu0 0
        %2159 = vmatprep.subr.bf16.mxu0 0
        %2160 = vmatpush1.bf16.msra.mxu0 0
        %2161 = vmatprep.subr.bf16.mxu0 0
        %2162 = vmatpush1.bf16.msra.mxu0 0
        %2163 = vmatprep.subr.bf16.mxu0 0
        %2164 = vmatpush1.bf16.msra.mxu0 0
        %2165 = vmatprep.subr.bf16.mxu0 0
        %2166 = vmatpush1.bf16.msra.mxu0 0
        %2167 = vmatprep.subr.bf16.mxu0 0
        %2168 = vmatpush1.bf16.msra.mxu0 0
        %2169 = vmatprep.subr.bf16.mxu0 0
        %2170 = vmatpush1.bf16.msra.mxu0 0
        %2171 = vmatprep.subr.bf16.mxu0 0
        %2172 = vmatpush1.bf16.msra.mxu0 0
        %2173 = vmatprep.mubr.bf16.mxu0 0
        %2174 = vmatmul.mubr.bf16.gmra.mrb[0].mxu0 %v1206
        %v2175 = vpop.f32.mrb[0].mxu0
        %v2176 = vadd.f32 %v1358, %v2175
        %v2177 = vpop.f32.mrb[0].mxu0
        %v2178 = vadd.f32 %v1362, %v2177
        %v2179 = vpop.f32.mrb[0].mxu0
        %v2180 = vpop.f32.mrb[0].mxu0
        %2181 = vdwg.mxu0
        %2182 = vmatprep.subr.bf16.mxu0 %v1810
        %2183 = vmatpush1.bf16.msra.mxu0 %v1809
        %2184 = vmatprep.subr.bf16.mxu0 %v1826
        %2185 = vmatpush1.bf16.msra.mxu0 %v1825
        %2186 = vmatprep.subr.bf16.mxu0 %v1842
        %2187 = vmatpush1.bf16.msra.mxu0 %v1841
        %2188 = vmatprep.subr.bf16.mxu0 %v1858
        %2189 = vmatpush1.bf16.msra.mxu0 %v1857
        %2190 = vmatprep.subr.bf16.mxu0 %v1874
        %2191 = vmatpush1.bf16.msra.mxu0 %v1873
        %2192 = vmatprep.subr.bf16.mxu0 %v1890
        %2193 = vmatpush1.bf16.msra.mxu0 %v1889
        %2194 = vmatprep.subr.bf16.mxu0 %v1906
        %2195 = vmatpush1.bf16.msra.mxu0 %v1905
        %2196 = vmatprep.subr.bf16.mxu0 %v1922
        %2197 = vmatpush1.bf16.msra.mxu0 %v1921
        %2198 = vmatprep.subr.bf16.mxu0 0
        %2199 = vmatpush1.bf16.msra.mxu0 0
        %2200 = vmatprep.subr.bf16.mxu0 0
        %2201 = vmatpush1.bf16.msra.mxu0 0
        %2202 = vmatprep.subr.bf16.mxu0 0
        %2203 = vmatpush1.bf16.msra.mxu0 0
        %2204 = vmatprep.subr.bf16.mxu0 0
        %2205 = vmatpush1.bf16.msra.mxu0 0
        %2206 = vmatprep.subr.bf16.mxu0 0
        %2207 = vmatpush1.bf16.msra.mxu0 0
        %2208 = vmatprep.subr.bf16.mxu0 0
        %2209 = vmatpush1.bf16.msra.mxu0 0
        %2210 = vmatprep.subr.bf16.mxu0 0
        %2211 = vmatpush1.bf16.msra.mxu0 0
        %2212 = vmatprep.subr.bf16.mxu0 0
        %2213 = vmatpush1.bf16.msra.mxu0 0
        %2214 = vmatprep.mubr.bf16.mxu0 0
        %2215 = vmatmul.mubr.bf16.gmra.mrb[0].mxu0 %v1206
        %v2216 = vpop.f32.mrb[0].mxu0
        %v2217 = vadd.f32 %v1366, %v2216
        %v2218 = vpop.f32.mrb[0].mxu0
        %v2219 = vadd.f32 %v1370, %v2218
        %v2220 = vpop.f32.mrb[0].mxu0
        %v2221 = vpop.f32.mrb[0].mxu0
        %2222 = vdwg.mxu0
        %2223 = vmatprep.subr.bf16.mxu0 %v1812
        %2224 = vmatpush1.bf16.msra.mxu0 %v1811
        %2225 = vmatprep.subr.bf16.mxu0 %v1828
        %2226 = vmatpush1.bf16.msra.mxu0 %v1827
        %2227 = vmatprep.subr.bf16.mxu0 %v1844
        %2228 = vmatpush1.bf16.msra.mxu0 %v1843
        %2229 = vmatprep.subr.bf16.mxu0 %v1860
        %2230 = vmatpush1.bf16.msra.mxu0 %v1859
        %2231 = vmatprep.subr.bf16.mxu0 %v1876
        %2232 = vmatpush1.bf16.msra.mxu0 %v1875
        %2233 = vmatprep.subr.bf16.mxu0 %v1892
        %2234 = vmatpush1.bf16.msra.mxu0 %v1891
        %2235 = vmatprep.subr.bf16.mxu0 %v1908
        %2236 = vmatpush1.bf16.msra.mxu0 %v1907
        %2237 = vmatprep.subr.bf16.mxu0 %v1924
        %2238 = vmatpush1.bf16.msra.mxu0 %v1923
        %2239 = vmatprep.subr.bf16.mxu0 0
        %2240 = vmatpush1.bf16.msra.mxu0 0
        %2241 = vmatprep.subr.bf16.mxu0 0
        %2242 = vmatpush1.bf16.msra.mxu0 0
        %2243 = vmatprep.subr.bf16.mxu0 0
        %2244 = vmatpush1.bf16.msra.mxu0 0
        %2245 = vmatprep.subr.bf16.mxu0 0
        %2246 = vmatpush1.bf16.msra.mxu0 0
        %2247 = vmatprep.subr.bf16.mxu0 0
        %2248 = vmatpush1.bf16.msra.mxu0 0
        %2249 = vmatprep.subr.bf16.mxu0 0
        %2250 = vmatpush1.bf16.msra.mxu0 0
        %2251 = vmatprep.subr.bf16.mxu0 0
        %2252 = vmatpush1.bf16.msra.mxu0 0
        %2253 = vmatprep.subr.bf16.mxu0 0
        %2254 = vmatpush1.bf16.msra.mxu0 0
        %2255 = vmatprep.mubr.bf16.mxu0 0
        %2256 = vmatmul.mubr.bf16.gmra.mrb[0].mxu0 %v1206
        %v2257 = vpop.f32.mrb[0].mxu0
        %v2258 = vadd.f32 %v1374, %v2257
        %v2259 = vpop.f32.mrb[0].mxu0
        %v2260 = vadd.f32 %v1378, %v2259
        %v2261 = vpop.f32.mrb[0].mxu0
        %v2262 = vpop.f32.mrb[0].mxu0
        %2263 = vdwg.mxu0
        %2264 = vmatprep.subr.bf16.mxu0 %v1814
        %2265 = vmatpush1.bf16.msra.mxu0 %v1813
        %2266 = vmatprep.subr.bf16.mxu0 %v1830
        %2267 = vmatpush1.bf16.msra.mxu0 %v1829
        %2268 = vmatprep.subr.bf16.mxu0 %v1846
        %2269 = vmatpush1.bf16.msra.mxu0 %v1845
        %2270 = vmatprep.subr.bf16.mxu0 %v1862
        %2271 = vmatpush1.bf16.msra.mxu0 %v1861
        %2272 = vmatprep.subr.bf16.mxu0 %v1878
        %2273 = vmatpush1.bf16.msra.mxu0 %v1877
        %2274 = vmatprep.subr.bf16.mxu0 %v1894
        %2275 = vmatpush1.bf16.msra.mxu0 %v1893
        %2276 = vmatprep.subr.bf16.mxu0 %v1910
        %2277 = vmatpush1.bf16.msra.mxu0 %v1909
        %2278 = vmatprep.subr.bf16.mxu0 %v1926
        %2279 = vmatpush1.bf16.msra.mxu0 %v1925
        %2280 = vmatprep.subr.bf16.mxu0 0
        %2281 = vmatpush1.bf16.msra.mxu0 0
        %2282 = vmatprep.subr.bf16.mxu0 0
        %2283 = vmatpush1.bf16.msra.mxu0 0
        %2284 = vmatprep.subr.bf16.mxu0 0
        %2285 = vmatpush1.bf16.msra.mxu0 0
        %2286 = vmatprep.subr.bf16.mxu0 0
        %2287 = vmatpush1.bf16.msra.mxu0 0
        %2288 = vmatprep.subr.bf16.mxu0 0
        %2289 = vmatpush1.bf16.msra.mxu0 0
        %2290 = vmatprep.subr.bf16.mxu0 0
        %2291 = vmatpush1.bf16.msra.mxu0 0
        %2292 = vmatprep.subr.bf16.mxu0 0
        %2293 = vmatpush1.bf16.msra.mxu0 0
        %2294 = vmatprep.subr.bf16.mxu0 0
        %2295 = vmatpush1.bf16.msra.mxu0 0
        %2296 = vmatprep.mubr.bf16.mxu0 0
        %2297 = vmatmul.mubr.bf16.gmra.mrb[0].mxu0 %v1206
        %v2298 = vpop.f32.mrb[0].mxu0
        %v2299 = vadd.f32 %v1382, %v2298
        %v2300 = vpop.f32.mrb[0].mxu0
        %v2301 = vadd.f32 %v1386, %v2300
        %v2302 = vpop.f32.mrb[0].mxu0
        %v2303 = vpop.f32.mrb[0].mxu0
        %2304 = vdwg.mxu0
        %2305 = vmatprep.subr.bf16.mxu0 %v1816
        %2306 = vmatpush1.bf16.msra.mxu0 %v1815
        %2307 = vmatprep.subr.bf16.mxu0 %v1832
        %2308 = vmatpush1.bf16.msra.mxu0 %v1831
        %2309 = vmatprep.subr.bf16.mxu0 %v1848
        %2310 = vmatpush1.bf16.msra.mxu0 %v1847
        %2311 = vmatprep.subr.bf16.mxu0 %v1864
        %2312 = vmatpush1.bf16.msra.mxu0 %v1863
        %2313 = vmatprep.subr.bf16.mxu0 %v1880
        %2314 = vmatpush1.bf16.msra.mxu0 %v1879
        %2315 = vmatprep.subr.bf16.mxu0 %v1896
        %2316 = vmatpush1.bf16.msra.mxu0 %v1895
        %2317 = vmatprep.subr.bf16.mxu0 %v1912
        %2318 = vmatpush1.bf16.msra.mxu0 %v1911
        %2319 = vmatprep.subr.bf16.mxu0 %v1928
        %2320 = vmatpush1.bf16.msra.mxu0 %v1927
        %2321 = vmatprep.subr.bf16.mxu0 0
        %2322 = vmatpush1.bf16.msra.mxu0 0
        %2323 = vmatprep.subr.bf16.mxu0 0
        %2324 = vmatpush1.bf16.msra.mxu0 0
        %2325 = vmatprep.subr.bf16.mxu0 0
        %2326 = vmatpush1.bf16.msra.mxu0 0
        %2327 = vmatprep.subr.bf16.mxu0 0
        %2328 = vmatpush1.bf16.msra.mxu0 0
        %2329 = vmatprep.subr.bf16.mxu0 0
        %2330 = vmatpush1.bf16.msra.mxu0 0
        %2331 = vmatprep.subr.bf16.mxu0 0
        %2332 = vmatpush1.bf16.msra.mxu0 0
        %2333 = vmatprep.subr.bf16.mxu0 0
        %2334 = vmatpush1.bf16.msra.mxu0 0
        %2335 = vmatprep.subr.bf16.mxu0 0
        %2336 = vmatpush1.bf16.msra.mxu0 0
        %2337 = vmatprep.mubr.bf16.mxu0 0
        %2338 = vmatmul.mubr.bf16.gmra.mrb[0].mxu0 %v1206
        %v2339 = vpop.f32.mrb[0].mxu0
        %v2340 = vadd.f32 %v1390, %v2339
        %v2341 = vpop.f32.mrb[0].mxu0
        %v2342 = vadd.f32 %v1394, %v2341
        %v2343 = vpop.f32.mrb[0].mxu0
        %v2344 = vpop.f32.mrb[0].mxu0
        %2345 = vdwg.mxu0
        %2346 = vmatprep.subr.bf16.mxu0 %v1818
        %2347 = vmatpush1.bf16.msra.mxu0 %v1817
        %2348 = vmatprep.subr.bf16.mxu0 %v1834
        %2349 = vmatpush1.bf16.msra.mxu0 %v1833
        %2350 = vmatprep.subr.bf16.mxu0 %v1850
        %2351 = vmatpush1.bf16.msra.mxu0 %v1849
        %2352 = vmatprep.subr.bf16.mxu0 %v1866
        %2353 = vmatpush1.bf16.msra.mxu0 %v1865
        %2354 = vmatprep.subr.bf16.mxu0 %v1882
        %2355 = vmatpush1.bf16.msra.mxu0 %v1881
        %2356 = vmatprep.subr.bf16.mxu0 %v1898
        %2357 = vmatpush1.bf16.msra.mxu0 %v1897
        %2358 = vmatprep.subr.bf16.mxu0 %v1914
        %2359 = vmatpush1.bf16.msra.mxu0 %v1913
        %2360 = vmatprep.subr.bf16.mxu0 %v1930
        %2361 = vmatpush1.bf16.msra.mxu0 %v1929
        %2362 = vmatprep.subr.bf16.mxu0 0
        %2363 = vmatpush1.bf16.msra.mxu0 0
        %2364 = vmatprep.subr.bf16.mxu0 0
        %2365 = vmatpush1.bf16.msra.mxu0 0
        %2366 = vmatprep.subr.bf16.mxu0 0
        %2367 = vmatpush1.bf16.msra.mxu0 0
        %2368 = vmatprep.subr.bf16.mxu0 0
        %2369 = vmatpush1.bf16.msra.mxu0 0
        %2370 = vmatprep.subr.bf16.mxu0 0
        %2371 = vmatpush1.bf16.msra.mxu0 0
        %2372 = vmatprep.subr.bf16.mxu0 0
        %2373 = vmatpush1.bf16.msra.mxu0 0
        %2374 = vmatprep.subr.bf16.mxu0 0
        %2375 = vmatpush1.bf16.msra.mxu0 0
        %2376 = vmatprep.subr.bf16.mxu0 0
        %2377 = vmatpush1.bf16.msra.mxu0 0
        %2378 = vmatprep.mubr.bf16.mxu0 0
        %2379 = vmatmul.mubr.bf16.gmra.mrb[0].mxu0 %v1206
        %v2380 = vpop.f32.mrb[0].mxu0
        %v2381 = vadd.f32 %v1398, %v2380
        %v2382 = vpop.f32.mrb[0].mxu0
        %v2383 = vadd.f32 %v1402, %v2382
        %v2384 = vpop.f32.mrb[0].mxu0
        %v2385 = vpop.f32.mrb[0].mxu0
        %2386 = vdwg.mxu0
        %2387 = vst [vmem:[%s494] sm:$0xff] %v2094
        %2388 = vst [vmem:[%s494 + $0x8] sm:$0xff] %v2096
        %2389 = vst [vmem:[%s494 + $0x10] sm:$0xff] %v2135
        %2390 = vst [vmem:[%s494 + $0x18] sm:$0xff] %v2137
        %2391 = vst [vmem:[%s494 + $0x20] sm:$0xff] %v2176
        %2392 = vst [vmem:[%s494 + $0x28] sm:$0xff] %v2178
        %2393 = vst [vmem:[%s494 + $0x30] sm:$0xff] %v2217
        %2394 = vst [vmem:[%s494 + $0x38] sm:$0xff] %v2219
        %2395 = vst [vmem:[%s494 + $0x40] sm:$0xff] %v2258
        %2396 = vst [vmem:[%s494 + $0x48] sm:$0xff] %v2260
        %2397 = vst [vmem:[%s494 + $0x50] sm:$0xff] %v2299
        %2398 = vst [vmem:[%s494 + $0x58] sm:$0xff] %v2301
        %2399 = vst [vmem:[%s494 + $0x60] sm:$0xff] %v2340
        %2400 = vst [vmem:[%s494 + $0x68] sm:$0xff] %v2342
        %2401 = vst [vmem:[%s494 + $0x70] sm:$0xff] %v2381
        %2402 = vst [vmem:[%s494 + $0x78] sm:$0xff] %v2383
        %s2403 = sand.u32 %s242, 1
        %s2404 = scalar_lea.sflag [#allocation7], %s2403
        %s2405 = sand.u32 %s242, 1
        %s2406 = smul.addr %s2405, 128
        %s2407 = scalar_lea.vmem [#allocation19], %s2406
        %p2408 = scmp.lt.s32.totalorder %s36, 1
        %s2409 = scalar_select %p2408, %s36, 1
        %s2410 = smul.addr %s2409, 8
        %s2411 = scalar_lea.vmem %s10, %s2410
        // Predicated region
        $region121: #{decoder_rnn_forward.1} parent=51 // pred_check
          %p2412 = pneg %p252
        $region122: #{decoder_rnn_forward.1} parent=51 // pred_check_branch
          %2414 = sbr.rel (%p2412) target = $region124
        $region123: #{decoder_rnn_forward.1} parent=51 // pred_region
          %s2415 = smul.u32 %s36, 2
          %s2416 = sadd.s32 %s2415, %s37
          %s2417 = smul.u32 16, %s2416
          %s2419 = ssub.s32 2048, 2048
          %2420 = vsyncadd %s2404, %s2419
          %s2421 = smul.addr %s2417, 128
          %s2422 = scalar_lea.hbm %s9, %s2421
          %s2424 = sshll.u32 %s2407, 4
          %s2425 = int_to_ptr.vmem [resolvable:$true] %s2424
          %2427 = dma.vmem_to_hbm [thread:$0]  %s2425, 2048, %s2422, %s2404
        $region124: #{decoder_rnn_forward.1} parent=51 // pred_fallthru
          _
        // Predicated region
        $region125: #{decoder_rnn_forward.1} parent=51 // pred_check
          %p2428 = pneg %p278
        $region126: #{decoder_rnn_forward.1} parent=51 // pred_check_branch
          %2430 = sbr.rel (%p2428) target = $region128
        $region127: #{decoder_rnn_forward.1} parent=51 // pred_region
          _
        $region128: #{decoder_rnn_forward.1} parent=51 // pred_fallthru
          _
      $region52: #{decoder_rnn_forward.1} parent=5 // pred_fallthru
        _
      %p2431 = scmp.le.s32.totalorder 2, %s27
      // Predicated region
      $region129: #{decoder_rnn_forward.1} parent=5 // pred_check
        %p2432 = pneg %p2431
      $region130: #{decoder_rnn_forward.1} parent=5 // pred_check_branch
        %2434 = sbr.rel (%p2432) target = $region132
      $region131: #{decoder_rnn_forward.1} parent=5 // pred_region
        %s2435 = ssub.s32 %s27, 2
        // Predicated region
        $region133: #{decoder_rnn_forward.1} parent=131 // pred_check
          %p2436 = pneg %p258
        $region134: #{decoder_rnn_forward.1} parent=131 // pred_check_branch
          %2438 = sbr.rel (%p2436) target = $region136
        $region135: #{decoder_rnn_forward.1} parent=131 // pred_region
          %s2439 = sand.u32 %s243, 1
          %s2440 = scalar_lea.sflag [#allocation7], %s2439
          %s2441 = sand.u32 %s243, 1
          %s2442 = smul.addr %s2441, 128
          %s2443 = scalar_lea.vmem [#allocation19], %s2442
          %2444 = dma.done %s2440, 2048
        $region136: #{decoder_rnn_forward.1} parent=131 // pred_fallthru
          _
        // Predicated region
        $region137: #{decoder_rnn_forward.1} parent=131 // pred_check
          %p2445 = pneg %p284
        $region138: #{decoder_rnn_forward.1} parent=131 // pred_check_branch
          %2447 = sbr.rel (%p2445) target = $region140
        $region139: #{decoder_rnn_forward.1} parent=131 // pred_region
          %p2448 = scmp.lt.s32.totalorder %s38, 1
          %s2449 = scalar_select %p2448, %s38, 1
          %s2450 = smul.addr %s2449, 8
          %s2451 = scalar_lea.vmem %s10, %s2450
        $region140: #{decoder_rnn_forward.1} parent=131 // pred_fallthru
          _
      $region132: #{decoder_rnn_forward.1} parent=5 // pred_fallthru
        _
    $region6: #{decoder_rnn_forward.1} parent=1 // loop_footer
      %s31 = sadd.s32 1, %s27
    $region7: #{decoder_rnn_forward.1} parent=1 // loop_footer_branch
      %26 = sbr.rel target = $region3
    $region8: #{decoder_rnn_forward.1} parent=1 // loop_exit
      _
    %2452 = vsyncpa [#allocation6], 1
    %s2453 = scalar_lea.sflag [#allocation6], 1
    %2454 = vsyncpa %s2453, 1
    %2455 = vsyncpa [#allocation11], 1
    %2456 = vsyncpa [#allocation14], 1
    %2457 = vsyncpa [#allocation17], 1
    %s2458 = scalar_lea.sflag [#allocation17], 1
    %2459 = vsyncpa %s2458, 1
    %2460 = vsyncpa [#allocation7], 1
    %s2461 = scalar_lea.sflag [#allocation7], 1
    %2462 = vsyncpa %s2461, 1
    %2463 = vsyncpa [#allocation8], 1
    %s2464 = scalar_lea.sflag [#allocation8], 1
    %2465 = vsyncpa %s2464, 1
  %2466 = vsyncmov [#allocation4]
  %s2467 = vpop.sfrf %2466
  %p2468 = scmp.eq.s32.totalorder %s2467, 0
  %p2469 = pneg %p2468
  %2471 = shalt.err (%p2469)
  %s2472 = scalar_lea.sflag [#allocation4], 1
  %2473 = vsyncmov %s2472
  %s2474 = vpop.sfrf %2473
  %p2475 = scmp.eq.s32.totalorder %s2474, 0
  %p2476 = pneg %p2475
  %2478 = shalt.err (%p2476)
  %s2479 = scalar_lea.sflag [#allocation4], 2
  %2480 = vsyncmov %s2479
  %s2481 = vpop.sfrf %2480
  %p2482 = scmp.eq.s32.totalorder %s2481, 0
  %p2483 = pneg %p2482
  %2485 = shalt.err (%p2483)
  %s2486 = scalar_lea.sflag [#allocation4], 3
  %2487 = vsyncmov %s2486
  %s2488 = vpop.sfrf %2487
  %p2489 = scmp.eq.s32.totalorder %s2488, 0
  %p2490 = pneg %p2489
  %2492 = shalt.err (%p2490)
  %s2493 = scalar_lea.sflag [#allocation4], 4
  %2494 = vsyncmov %s2493
  %s2495 = vpop.sfrf %2494
  %p2496 = scmp.eq.s32.totalorder %s2495, 0
  %p2497 = pneg %p2496
  %2499 = shalt.err (%p2497)
  %s2500 = scalar_lea.sflag [#allocation4], 5
  %2501 = vsyncmov %s2500
  %s2502 = vpop.sfrf %2501
  %p2503 = scmp.eq.s32.totalorder %s2502, 0
  %p2504 = pneg %p2503
  %2506 = shalt.err (%p2504)
  %s2507 = scalar_lea.sflag [#allocation4], 6
  %2508 = vsyncmov %s2507
  %s2509 = vpop.sfrf %2508
  %p2510 = scmp.eq.s32.totalorder %s2509, 0
  %p2511 = pneg %p2510
  %2513 = shalt.err (%p2511)
  %s2514 = scalar_lea.sflag [#allocation4], 7
  %2515 = vsyncmov %s2514
  %s2516 = vpop.sfrf %2515
  %p2517 = scmp.eq.s32.totalorder %s2516, 0
  %p2518 = pneg %p2517
  %2520 = shalt.err (%p2518)

</llo_original>
